<compile_context>
chip_gen: v7x
topology: tpu7x:2x2x1
jax: 0.10.0
libtpu: 0.0.40
codegen_flags: <defaults>
</compile_context>

<pallas_src>
import jax
import jax.numpy as jnp
from jax import lax
from jax.experimental import pallas as pl
from jax.experimental.pallas import tpu as pltpu

B_PAD = 8  # one f32 sublane tile


# ----------------------------- Pallas kernel ------------------------------ #
def lstm_agent_kernel(x_ref, wih_ref, whh_ref, b_ref, wfc_ref, bfc_ref, out_ref):
    # x_ref   : (T*B_PAD, D_in) f32  time-major, batch padded to 8, flattened
    # wih_ref : (D_in, 4H)      f32  (W_ih^T, columns pre-scaled by 0.5 on i/f/o)
    # whh_ref : (H, 4H)         f32  (W_hh^T, columns pre-scaled by 0.5 on i/f/o)
    # b_ref   : (1, 4H)         f32  ((b_ih + b_hh) pre-scaled by 0.5 on i/f/o)
    # wfc_ref : (H, D_out)      f32  (W_fc^T)
    # bfc_ref : (1, D_out)      f32
    # out_ref : (B, D_out)      f32
    TBP = x_ref.shape[0]
    T = TBP // B_PAD
    H = whh_ref.shape[0]
    B = out_ref.shape[0]

    # Hoisted, pre-scaled input projection + bias for ALL timesteps: one MXU
    # matmul instead of T tiny ones inside the recurrence.  Kept as a value
    # (16 f32 vregs after padding); sliced with static, 8-row-aligned offsets.
    gx = (
        jnp.dot(x_ref[...], wih_ref[...], preferred_element_type=jnp.float32)
        + b_ref[...]
    )

    whh = whh_ref[...]  # load once; reused every step

    h = jnp.zeros((B_PAD, H), jnp.float32)
    c = jnp.zeros((B_PAD, H), jnp.float32)

    # Fully unrolled recurrence (T is small and static).
    for t in range(T):
        if t == 0:
            # h == 0 at t=0: skip the h @ W_hh matmul entirely.
            z = gx[0:B_PAD, :]
        else:
            z = gx[t * B_PAD:(t + 1) * B_PAD, :] + jnp.dot(
                h, whh, preferred_element_type=jnp.float32)          # (8, 4H)
        # Single EUP pass: tanh over the whole (8, 4H) tile.  Because the i/f/o
        # gate columns were pre-scaled by 0.5 in the weights/bias, sigmoid is
        # recovered on the VPU as 0.5 * tanh + 0.5.
        th = jnp.tanh(z)
        sg = 0.5 * th + 0.5
        i_g = sg[:, 0 * H:1 * H]
        f_g = sg[:, 1 * H:2 * H]
        g_g = th[:, 2 * H:3 * H]
        o_g = sg[:, 3 * H:4 * H]
        c = f_g * c + i_g * g_g
        h = o_g * jnp.tanh(c)          # second (and last) EUP pass of the step

    # Final FC on the last hidden state; only the real batch rows are stored.
    fc = jnp.dot(h, wfc_ref[...], preferred_element_type=jnp.float32) + bfc_ref[...]
    out_ref[...] = fc[0:B, :]


# ----------------------- one-time parameter preparation -------------------- #
def prepare_params(params):
    """Pre-transpose weights, fuse biases, and fold the 0.5 sigmoid-via-tanh
    scale into the i/f/o gate columns ONCE (model-load time)."""
    H = params["w_hh"].shape[1]
    scale = jnp.concatenate([
        jnp.full((H,), 0.5, jnp.float32),   # i
        jnp.full((H,), 0.5, jnp.float32),   # f
        jnp.ones((H,), jnp.float32),        # g (plain tanh)
        jnp.full((H,), 0.5, jnp.float32),   # o
    ])
    wih_t = jnp.asarray(params["w_ih"].T, jnp.float32) * scale        # (D_in, 4H)
    whh_t = jnp.asarray(params["w_hh"].T, jnp.float32) * scale        # (H, 4H)
    b = ((params["b_ih"] + params["b_hh"]).astype(jnp.float32) * scale).reshape(1, -1)
    return dict(
        wih_t=wih_t,
        whh_t=whh_t,
        b=b,
        wfc_t=jnp.asarray(params["w_fc"].T, jnp.float32),             # (H, D_out)
        bfc=params["b_fc"].reshape(1, -1).astype(jnp.float32),        # (1, D_out)
    )


# ------------------------------- wrapper ---------------------------------- #
@jax.jit
def lstm_agent_forward(x, prepped):
    """Pallas equivalent of LSTMAgent.forward.  x: (B, C, H, W) float32."""
    B = x.shape[0]
    T = x.shape[2]
    assert B <= B_PAD, "this tiny-batch kernel pads B up to one sublane tile"
    # matches torch `x.view(x.size(0), x.size(2), -1)` on a contiguous tensor
    x_seq = jnp.reshape(x, (B, T, -1)).astype(jnp.float32)            # (B, T, D_in), free view
    # time-major + batch padded to 8 + flattened.  XLA fuses transpose+pad+
    # reshape into a single ~32 KiB copy feeding the pallas_call.
    x_tm = jnp.transpose(x_seq, (1, 0, 2))                            # (T, B, D_in)
    x_tm = jnp.pad(x_tm, ((0, 0), (0, B_PAD - B), (0, 0)))            # (T, 8, D_in)
    x_tb = jnp.reshape(x_tm, (T * B_PAD, -1))                         # (T*8, D_in)

    d_out = prepped["wfc_t"].shape[1]
    vmem = pl.BlockSpec(memory_space=pltpu.MemorySpace.VMEM)
    return pl.pallas_call(
        lstm_agent_kernel,
        out_shape=jax.ShapeDtypeStruct((B, d_out), jnp.float32),
        in_specs=[vmem] * 6,
        out_specs=vmem,
    )(x_tb, prepped["wih_t"], prepped["whh_t"], prepped["b"],
      prepped["wfc_t"], prepped["bfc"])


# ------------------------- deterministic parameters ------------------------ #
def init_params(key, input_size, hidden_size, output_size):
    """Matches nn.LSTM / nn.Linear default U(-1/sqrt(hidden), 1/sqrt(hidden)) init."""
    ks = jax.random.split(key, 6)
    k_lstm = 1.0 / jnp.sqrt(jnp.float32(hidden_size))
    k_fc = 1.0 / jnp.sqrt(jnp.float32(hidden_size))

    def u(k, shape, bound):
        return jax.random.uniform(k, shape, jnp.float32, -bound, bound)

    return dict(
        w_ih=u(ks[0], (4 * hidden_size, input_size), k_lstm),
        w_hh=u(ks[1], (4 * hidden_size, hidden_size), k_lstm),
        b_ih=u(ks[2], (4 * hidden_size,), k_lstm),
        b_hh=u(ks[3], (4 * hidden_size,), k_lstm),
        w_fc=u(ks[4], (output_size, hidden_size), k_fc),
        b_fc=u(ks[5], (output_size,), k_fc),
    )


# ---------------------------- pure-JAX reference --------------------------- #
def lstm_agent_reference(x, params):
    B = x.shape[0]
    T = x.shape[2]
    x_seq = jnp.reshape(x, (B, T, -1)).astype(jnp.float32)
    H = params["w_hh"].shape[1]
    wih_t = params["w_ih"].T
    whh_t = params["w_hh"].T
    b = params["b_ih"] + params["b_hh"]

    def step(carry, x_t):
        h, c = carry
        gates = x_t @ wih_t + h @ whh_t + b
        i_g = jax.nn.sigmoid(gates[:, 0 * H:1 * H])
        f_g = jax.nn.sigmoid(gates[:, 1 * H:2 * H])
        g_g = jnp.tanh(gates[:, 2 * H:3 * H])
        o_g = jax.nn.sigmoid(gates[:, 3 * H:4 * H])
        c_new = f_g * c + i_g * g_g
        h_new = o_g * jnp.tanh(c_new)
        return (h_new, c_new), None

    h0 = jnp.zeros((B, H), jnp.float32)
    c0 = jnp.zeros((B, H), jnp.float32)
    (h_T, _), _ = lax.scan(step, (h0, c0), jnp.transpose(x_seq, (1, 0, 2)))
    return h_T @ params["w_fc"].T + params["b_fc"]


# ---------------------------------- main ----------------------------------- #
if __name__ == "__main__":
    B, C, H_sp, W_sp = 2, 4, 16, 16          # NCHW input
    seq_len = H_sp                           # T = x.size(2)
    input_size = C * W_sp                    # D_in after the .view reshape
    hidden_size = 32
    output_size = 8

    key = jax.random.PRNGKey(0)
    kx, kp = jax.random.split(key)
    x = jax.random.normal(kx, (B, C, H_sp, W_sp), dtype=jnp.float32)
    params = init_params(kp, input_size, hidden_size, output_size)
    prepped = prepare_params(params)         # one-time weight prep

    out = lstm_agent_forward(x, prepped)
    out = jax.block_until_ready(out)

    ref = jax.block_until_ready(lstm_agent_reference(x, params))
    assert out.shape == (B, output_size)
    assert jnp.allclose(out, ref, atol=1e-5, rtol=1e-5), "Pallas kernel mismatch vs reference"

    print("KERNEL_OK")
</pallas_src>

<mosaic_0001>
module attributes {stable_mosaic.version = 11 : i64} {
  func.func @lstm_agent_kernel(%arg0: memref<128x64xf32, #tpu.memory_space<vmem>>, %arg1: memref<64x128xf32, #tpu.memory_space<vmem>>, %arg2: memref<32x128xf32, #tpu.memory_space<vmem>>, %arg3: memref<1x128xf32, #tpu.memory_space<vmem>>, %arg4: memref<32x8xf32, #tpu.memory_space<vmem>>, %arg5: memref<1x8xf32, #tpu.memory_space<vmem>>, %arg6: memref<2x8xf32, #tpu.memory_space<vmem>>) attributes {dimension_semantics = [], scalar_prefetch = 0 : i64, scratch_operands = 0 : i64, tpu.core_type = #tpu.core_type<tc>} {
    %c0 = arith.constant 0 : index
    %c0_0 = arith.constant 0 : index
    %0 = vector.load %arg0[%c0, %c0_0] : memref<128x64xf32, #tpu.memory_space<vmem>>, vector<128x64xf32>
    %c0_1 = arith.constant 0 : index
    %c0_2 = arith.constant 0 : index
    %1 = vector.load %arg1[%c0_1, %c0_2] : memref<64x128xf32, #tpu.memory_space<vmem>>, vector<64x128xf32>
    %cst = arith.constant dense<0.000000e+00> : vector<128x128xf32>
    %2 = tpu.matmul %0, %1, %cst {dimension_numbers = #tpu.dot_dimension_numbers<[1], [0], [0], [1], [0, 0, 1, 1], [], []>} : vector<128x64xf32>, vector<64x128xf32>, vector<128x128xf32> -> vector<128x128xf32>
    %c0_3 = arith.constant 0 : index
    %c0_4 = arith.constant 0 : index
    %3 = vector.load %arg3[%c0_3, %c0_4] : memref<1x128xf32, #tpu.memory_space<vmem>>, vector<1x128xf32>
    %4 = vector.broadcast %3 : vector<1x128xf32> to vector<128x128xf32>
    %5 = arith.addf %2, %4 : vector<128x128xf32>
    %c0_5 = arith.constant 0 : index
    %c0_6 = arith.constant 0 : index
    %6 = vector.load %arg2[%c0_5, %c0_6] : memref<32x128xf32, #tpu.memory_space<vmem>>, vector<32x128xf32>
    %cst_7 = arith.constant 0.000000e+00 : f32
    %7 = vector.broadcast %cst_7 : f32 to vector<8x32xf32>
    %8 = vector.extract_strided_slice %5 {offsets = [0, 0], sizes = [8, 128], strides = [1, 1]} : vector<128x128xf32> to vector<8x128xf32>
    %9 = math.tanh %8 : vector<8x128xf32>
    %cst_8 = arith.constant 5.000000e-01 : f32
    %10 = vector.broadcast %cst_8 : f32 to vector<8x128xf32>
    %11 = arith.mulf %10, %9 : vector<8x128xf32>
    %cst_9 = arith.constant 5.000000e-01 : f32
    %12 = vector.broadcast %cst_9 : f32 to vector<8x128xf32>
    %13 = arith.addf %11, %12 : vector<8x128xf32>
    %14 = vector.extract_strided_slice %13 {offsets = [0, 0], sizes = [8, 32], strides = [1, 1]} : vector<8x128xf32> to vector<8x32xf32>
    %15 = vector.extract_strided_slice %13 {offsets = [0, 32], sizes = [8, 32], strides = [1, 1]} : vector<8x128xf32> to vector<8x32xf32>
    %16 = vector.extract_strided_slice %9 {offsets = [0, 64], sizes = [8, 32], strides = [1, 1]} : vector<8x128xf32> to vector<8x32xf32>
    %17 = vector.extract_strided_slice %13 {offsets = [0, 96], sizes = [8, 32], strides = [1, 1]} : vector<8x128xf32> to vector<8x32xf32>
    %18 = arith.mulf %15, %7 : vector<8x32xf32>
    %19 = arith.mulf %14, %16 : vector<8x32xf32>
    %20 = arith.addf %18, %19 : vector<8x32xf32>
    %21 = math.tanh %20 : vector<8x32xf32>
    %22 = arith.mulf %17, %21 : vector<8x32xf32>
    %23 = vector.extract_strided_slice %5 {offsets = [8, 0], sizes = [8, 128], strides = [1, 1]} : vector<128x128xf32> to vector<8x128xf32>
    %cst_10 = arith.constant dense<0.000000e+00> : vector<8x128xf32>
    %24 = tpu.matmul %22, %6, %cst_10 {dimension_numbers = #tpu.dot_dimension_numbers<[1], [0], [0], [1], [0, 0, 1, 1], [], []>} : vector<8x32xf32>, vector<32x128xf32>, vector<8x128xf32> -> vector<8x128xf32>
    %25 = arith.addf %23, %24 : vector<8x128xf32>
    %26 = math.tanh %25 : vector<8x128xf32>
    %cst_11 = arith.constant 5.000000e-01 : f32
    %27 = vector.broadcast %cst_11 : f32 to vector<8x128xf32>
    %28 = arith.mulf %27, %26 : vector<8x128xf32>
    %cst_12 = arith.constant 5.000000e-01 : f32
    %29 = vector.broadcast %cst_12 : f32 to vector<8x128xf32>
    %30 = arith.addf %28, %29 : vector<8x128xf32>
    %31 = vector.extract_strided_slice %30 {offsets = [0, 0], sizes = [8, 32], strides = [1, 1]} : vector<8x128xf32> to vector<8x32xf32>
    %32 = vector.extract_strided_slice %30 {offsets = [0, 32], sizes = [8, 32], strides = [1, 1]} : vector<8x128xf32> to vector<8x32xf32>
    %33 = vector.extract_strided_slice %26 {offsets = [0, 64], sizes = [8, 32], strides = [1, 1]} : vector<8x128xf32> to vector<8x32xf32>
    %34 = vector.extract_strided_slice %30 {offsets = [0, 96], sizes = [8, 32], strides = [1, 1]} : vector<8x128xf32> to vector<8x32xf32>
    %35 = arith.mulf %32, %20 : vector<8x32xf32>
    %36 = arith.mulf %31, %33 : vector<8x32xf32>
    %37 = arith.addf %35, %36 : vector<8x32xf32>
    %38 = math.tanh %37 : vector<8x32xf32>
    %39 = arith.mulf %34, %38 : vector<8x32xf32>
    %40 = vector.extract_strided_slice %5 {offsets = [16, 0], sizes = [8, 128], strides = [1, 1]} : vector<128x128xf32> to vector<8x128xf32>
    %cst_13 = arith.constant dense<0.000000e+00> : vector<8x128xf32>
    %41 = tpu.matmul %39, %6, %cst_13 {dimension_numbers = #tpu.dot_dimension_numbers<[1], [0], [0], [1], [0, 0, 1, 1], [], []>} : vector<8x32xf32>, vector<32x128xf32>, vector<8x128xf32> -> vector<8x128xf32>
    %42 = arith.addf %40, %41 : vector<8x128xf32>
    %43 = math.tanh %42 : vector<8x128xf32>
    %cst_14 = arith.constant 5.000000e-01 : f32
    %44 = vector.broadcast %cst_14 : f32 to vector<8x128xf32>
    %45 = arith.mulf %44, %43 : vector<8x128xf32>
    %cst_15 = arith.constant 5.000000e-01 : f32
    %46 = vector.broadcast %cst_15 : f32 to vector<8x128xf32>
    %47 = arith.addf %45, %46 : vector<8x128xf32>
    %48 = vector.extract_strided_slice %47 {offsets = [0, 0], sizes = [8, 32], strides = [1, 1]} : vector<8x128xf32> to vector<8x32xf32>
    %49 = vector.extract_strided_slice %47 {offsets = [0, 32], sizes = [8, 32], strides = [1, 1]} : vector<8x128xf32> to vector<8x32xf32>
    %50 = vector.extract_strided_slice %43 {offsets = [0, 64], sizes = [8, 32], strides = [1, 1]} : vector<8x128xf32> to vector<8x32xf32>
    %51 = vector.extract_strided_slice %47 {offsets = [0, 96], sizes = [8, 32], strides = [1, 1]} : vector<8x128xf32> to vector<8x32xf32>
    %52 = arith.mulf %49, %37 : vector<8x32xf32>
    %53 = arith.mulf %48, %50 : vector<8x32xf32>
    %54 = arith.addf %52, %53 : vector<8x32xf32>
    %55 = math.tanh %54 : vector<8x32xf32>
    %56 = arith.mulf %51, %55 : vector<8x32xf32>
    %57 = vector.extract_strided_slice %5 {offsets = [24, 0], sizes = [8, 128], strides = [1, 1]} : vector<128x128xf32> to vector<8x128xf32>
    %cst_16 = arith.constant dense<0.000000e+00> : vector<8x128xf32>
    %58 = tpu.matmul %56, %6, %cst_16 {dimension_numbers = #tpu.dot_dimension_numbers<[1], [0], [0], [1], [0, 0, 1, 1], [], []>} : vector<8x32xf32>, vector<32x128xf32>, vector<8x128xf32> -> vector<8x128xf32>
    %59 = arith.addf %57, %58 : vector<8x128xf32>
    %60 = math.tanh %59 : vector<8x128xf32>
    %cst_17 = arith.constant 5.000000e-01 : f32
    %61 = vector.broadcast %cst_17 : f32 to vector<8x128xf32>
    %62 = arith.mulf %61, %60 : vector<8x128xf32>
    %cst_18 = arith.constant 5.000000e-01 : f32
    %63 = vector.broadcast %cst_18 : f32 to vector<8x128xf32>
    %64 = arith.addf %62, %63 : vector<8x128xf32>
    %65 = vector.extract_strided_slice %64 {offsets = [0, 0], sizes = [8, 32], strides = [1, 1]} : vector<8x128xf32> to vector<8x32xf32>
    %66 = vector.extract_strided_slice %64 {offsets = [0, 32], sizes = [8, 32], strides = [1, 1]} : vector<8x128xf32> to vector<8x32xf32>
    %67 = vector.extract_strided_slice %60 {offsets = [0, 64], sizes = [8, 32], strides = [1, 1]} : vector<8x128xf32> to vector<8x32xf32>
    %68 = vector.extract_strided_slice %64 {offsets = [0, 96], sizes = [8, 32], strides = [1, 1]} : vector<8x128xf32> to vector<8x32xf32>
    %69 = arith.mulf %66, %54 : vector<8x32xf32>
    %70 = arith.mulf %65, %67 : vector<8x32xf32>
    %71 = arith.addf %69, %70 : vector<8x32xf32>
    %72 = math.tanh %71 : vector<8x32xf32>
    %73 = arith.mulf %68, %72 : vector<8x32xf32>
    %74 = vector.extract_strided_slice %5 {offsets = [32, 0], sizes = [8, 128], strides = [1, 1]} : vector<128x128xf32> to vector<8x128xf32>
    %cst_19 = arith.constant dense<0.000000e+00> : vector<8x128xf32>
    %75 = tpu.matmul %73, %6, %cst_19 {dimension_numbers = #tpu.dot_dimension_numbers<[1], [0], [0], [1], [0, 0, 1, 1], [], []>} : vector<8x32xf32>, vector<32x128xf32>, vector<8x128xf32> -> vector<8x128xf32>
    %76 = arith.addf %74, %75 : vector<8x128xf32>
    %77 = math.tanh %76 : vector<8x128xf32>
    %cst_20 = arith.constant 5.000000e-01 : f32
    %78 = vector.broadcast %cst_20 : f32 to vector<8x128xf32>
    %79 = arith.mulf %78, %77 : vector<8x128xf32>
    %cst_21 = arith.constant 5.000000e-01 : f32
    %80 = vector.broadcast %cst_21 : f32 to vector<8x128xf32>
    %81 = arith.addf %79, %80 : vector<8x128xf32>
    %82 = vector.extract_strided_slice %81 {offsets = [0, 0], sizes = [8, 32], strides = [1, 1]} : vector<8x128xf32> to vector<8x32xf32>
    %83 = vector.extract_strided_slice %81 {offsets = [0, 32], sizes = [8, 32], strides = [1, 1]} : vector<8x128xf32> to vector<8x32xf32>
    %84 = vector.extract_strided_slice %77 {offsets = [0, 64], sizes = [8, 32], strides = [1, 1]} : vector<8x128xf32> to vector<8x32xf32>
    %85 = vector.extract_strided_slice %81 {offsets = [0, 96], sizes = [8, 32], strides = [1, 1]} : vector<8x128xf32> to vector<8x32xf32>
    %86 = arith.mulf %83, %71 : vector<8x32xf32>
    %87 = arith.mulf %82, %84 : vector<8x32xf32>
    %88 = arith.addf %86, %87 : vector<8x32xf32>
    %89 = math.tanh %88 : vector<8x32xf32>
    %90 = arith.mulf %85, %89 : vector<8x32xf32>
    %91 = vector.extract_strided_slice %5 {offsets = [40, 0], sizes = [8, 128], strides = [1, 1]} : vector<128x128xf32> to vector<8x128xf32>
    %cst_22 = arith.constant dense<0.000000e+00> : vector<8x128xf32>
    %92 = tpu.matmul %90, %6, %cst_22 {dimension_numbers = #tpu.dot_dimension_numbers<[1], [0], [0], [1], [0, 0, 1, 1], [], []>} : vector<8x32xf32>, vector<32x128xf32>, vector<8x128xf32> -> vector<8x128xf32>
    %93 = arith.addf %91, %92 : vector<8x128xf32>
    %94 = math.tanh %93 : vector<8x128xf32>
    %cst_23 = arith.constant 5.000000e-01 : f32
    %95 = vector.broadcast %cst_23 : f32 to vector<8x128xf32>
    %96 = arith.mulf %95, %94 : vector<8x128xf32>
    %cst_24 = arith.constant 5.000000e-01 : f32
    %97 = vector.broadcast %cst_24 : f32 to vector<8x128xf32>
    %98 = arith.addf %96, %97 : vector<8x128xf32>
    %99 = vector.extract_strided_slice %98 {offsets = [0, 0], sizes = [8, 32], strides = [1, 1]} : vector<8x128xf32> to vector<8x32xf32>
    %100 = vector.extract_strided_slice %98 {offsets = [0, 32], sizes = [8, 32], strides = [1, 1]} : vector<8x128xf32> to vector<8x32xf32>
    %101 = vector.extract_strided_slice %94 {offsets = [0, 64], sizes = [8, 32], strides = [1, 1]} : vector<8x128xf32> to vector<8x32xf32>
    %102 = vector.extract_strided_slice %98 {offsets = [0, 96], sizes = [8, 32], strides = [1, 1]} : vector<8x128xf32> to vector<8x32xf32>
    %103 = arith.mulf %100, %88 : vector<8x32xf32>
    %104 = arith.mulf %99, %101 : vector<8x32xf32>
    %105 = arith.addf %103, %104 : vector<8x32xf32>
    %106 = math.tanh %105 : vector<8x32xf32>
    %107 = arith.mulf %102, %106 : vector<8x32xf32>
    %108 = vector.extract_strided_slice %5 {offsets = [48, 0], sizes = [8, 128], strides = [1, 1]} : vector<128x128xf32> to vector<8x128xf32>
    %cst_25 = arith.constant dense<0.000000e+00> : vector<8x128xf32>
    %109 = tpu.matmul %107, %6, %cst_25 {dimension_numbers = #tpu.dot_dimension_numbers<[1], [0], [0], [1], [0, 0, 1, 1], [], []>} : vector<8x32xf32>, vector<32x128xf32>, vector<8x128xf32> -> vector<8x128xf32>
    %110 = arith.addf %108, %109 : vector<8x128xf32>
    %111 = math.tanh %110 : vector<8x128xf32>
    %cst_26 = arith.constant 5.000000e-01 : f32
    %112 = vector.broadcast %cst_26 : f32 to vector<8x128xf32>
    %113 = arith.mulf %112, %111 : vector<8x128xf32>
    %cst_27 = arith.constant 5.000000e-01 : f32
    %114 = vector.broadcast %cst_27 : f32 to vector<8x128xf32>
    %115 = arith.addf %113, %114 : vector<8x128xf32>
    %116 = vector.extract_strided_slice %115 {offsets = [0, 0], sizes = [8, 32], strides = [1, 1]} : vector<8x128xf32> to vector<8x32xf32>
    %117 = vector.extract_strided_slice %115 {offsets = [0, 32], sizes = [8, 32], strides = [1, 1]} : vector<8x128xf32> to vector<8x32xf32>
    %118 = vector.extract_strided_slice %111 {offsets = [0, 64], sizes = [8, 32], strides = [1, 1]} : vector<8x128xf32> to vector<8x32xf32>
    %119 = vector.extract_strided_slice %115 {offsets = [0, 96], sizes = [8, 32], strides = [1, 1]} : vector<8x128xf32> to vector<8x32xf32>
    %120 = arith.mulf %117, %105 : vector<8x32xf32>
    %121 = arith.mulf %116, %118 : vector<8x32xf32>
    %122 = arith.addf %120, %121 : vector<8x32xf32>
    %123 = math.tanh %122 : vector<8x32xf32>
    %124 = arith.mulf %119, %123 : vector<8x32xf32>
    %125 = vector.extract_strided_slice %5 {offsets = [56, 0], sizes = [8, 128], strides = [1, 1]} : vector<128x128xf32> to vector<8x128xf32>
    %cst_28 = arith.constant dense<0.000000e+00> : vector<8x128xf32>
    %126 = tpu.matmul %124, %6, %cst_28 {dimension_numbers = #tpu.dot_dimension_numbers<[1], [0], [0], [1], [0, 0, 1, 1], [], []>} : vector<8x32xf32>, vector<32x128xf32>, vector<8x128xf32> -> vector<8x128xf32>
    %127 = arith.addf %125, %126 : vector<8x128xf32>
    %128 = math.tanh %127 : vector<8x128xf32>
    %cst_29 = arith.constant 5.000000e-01 : f32
    %129 = vector.broadcast %cst_29 : f32 to vector<8x128xf32>
    %130 = arith.mulf %129, %128 : vector<8x128xf32>
    %cst_30 = arith.constant 5.000000e-01 : f32
    %131 = vector.broadcast %cst_30 : f32 to vector<8x128xf32>
    %132 = arith.addf %130, %131 : vector<8x128xf32>
    %133 = vector.extract_strided_slice %132 {offsets = [0, 0], sizes = [8, 32], strides = [1, 1]} : vector<8x128xf32> to vector<8x32xf32>
    %134 = vector.extract_strided_slice %132 {offsets = [0, 32], sizes = [8, 32], strides = [1, 1]} : vector<8x128xf32> to vector<8x32xf32>
    %135 = vector.extract_strided_slice %128 {offsets = [0, 64], sizes = [8, 32], strides = [1, 1]} : vector<8x128xf32> to vector<8x32xf32>
    %136 = vector.extract_strided_slice %132 {offsets = [0, 96], sizes = [8, 32], strides = [1, 1]} : vector<8x128xf32> to vector<8x32xf32>
    %137 = arith.mulf %134, %122 : vector<8x32xf32>
    %138 = arith.mulf %133, %135 : vector<8x32xf32>
    %139 = arith.addf %137, %138 : vector<8x32xf32>
    %140 = math.tanh %139 : vector<8x32xf32>
    %141 = arith.mulf %136, %140 : vector<8x32xf32>
    %142 = vector.extract_strided_slice %5 {offsets = [64, 0], sizes = [8, 128], strides = [1, 1]} : vector<128x128xf32> to vector<8x128xf32>
    %cst_31 = arith.constant dense<0.000000e+00> : vector<8x128xf32>
    %143 = tpu.matmul %141, %6, %cst_31 {dimension_numbers = #tpu.dot_dimension_numbers<[1], [0], [0], [1], [0, 0, 1, 1], [], []>} : vector<8x32xf32>, vector<32x128xf32>, vector<8x128xf32> -> vector<8x128xf32>
    %144 = arith.addf %142, %143 : vector<8x128xf32>
    %145 = math.tanh %144 : vector<8x128xf32>
    %cst_32 = arith.constant 5.000000e-01 : f32
    %146 = vector.broadcast %cst_32 : f32 to vector<8x128xf32>
    %147 = arith.mulf %146, %145 : vector<8x128xf32>
    %cst_33 = arith.constant 5.000000e-01 : f32
    %148 = vector.broadcast %cst_33 : f32 to vector<8x128xf32>
    %149 = arith.addf %147, %148 : vector<8x128xf32>
    %150 = vector.extract_strided_slice %149 {offsets = [0, 0], sizes = [8, 32], strides = [1, 1]} : vector<8x128xf32> to vector<8x32xf32>
    %151 = vector.extract_strided_slice %149 {offsets = [0, 32], sizes = [8, 32], strides = [1, 1]} : vector<8x128xf32> to vector<8x32xf32>
    %152 = vector.extract_strided_slice %145 {offsets = [0, 64], sizes = [8, 32], strides = [1, 1]} : vector<8x128xf32> to vector<8x32xf32>
    %153 = vector.extract_strided_slice %149 {offsets = [0, 96], sizes = [8, 32], strides = [1, 1]} : vector<8x128xf32> to vector<8x32xf32>
    %154 = arith.mulf %151, %139 : vector<8x32xf32>
    %155 = arith.mulf %150, %152 : vector<8x32xf32>
    %156 = arith.addf %154, %155 : vector<8x32xf32>
    %157 = math.tanh %156 : vector<8x32xf32>
    %158 = arith.mulf %153, %157 : vector<8x32xf32>
    %159 = vector.extract_strided_slice %5 {offsets = [72, 0], sizes = [8, 128], strides = [1, 1]} : vector<128x128xf32> to vector<8x128xf32>
    %cst_34 = arith.constant dense<0.000000e+00> : vector<8x128xf32>
    %160 = tpu.matmul %158, %6, %cst_34 {dimension_numbers = #tpu.dot_dimension_numbers<[1], [0], [0], [1], [0, 0, 1, 1], [], []>} : vector<8x32xf32>, vector<32x128xf32>, vector<8x128xf32> -> vector<8x128xf32>
    %161 = arith.addf %159, %160 : vector<8x128xf32>
    %162 = math.tanh %161 : vector<8x128xf32>
    %cst_35 = arith.constant 5.000000e-01 : f32
    %163 = vector.broadcast %cst_35 : f32 to vector<8x128xf32>
    %164 = arith.mulf %163, %162 : vector<8x128xf32>
    %cst_36 = arith.constant 5.000000e-01 : f32
    %165 = vector.broadcast %cst_36 : f32 to vector<8x128xf32>
    %166 = arith.addf %164, %165 : vector<8x128xf32>
    %167 = vector.extract_strided_slice %166 {offsets = [0, 0], sizes = [8, 32], strides = [1, 1]} : vector<8x128xf32> to vector<8x32xf32>
    %168 = vector.extract_strided_slice %166 {offsets = [0, 32], sizes = [8, 32], strides = [1, 1]} : vector<8x128xf32> to vector<8x32xf32>
    %169 = vector.extract_strided_slice %162 {offsets = [0, 64], sizes = [8, 32], strides = [1, 1]} : vector<8x128xf32> to vector<8x32xf32>
    %170 = vector.extract_strided_slice %166 {offsets = [0, 96], sizes = [8, 32], strides = [1, 1]} : vector<8x128xf32> to vector<8x32xf32>
    %171 = arith.mulf %168, %156 : vector<8x32xf32>
    %172 = arith.mulf %167, %169 : vector<8x32xf32>
    %173 = arith.addf %171, %172 : vector<8x32xf32>
    %174 = math.tanh %173 : vector<8x32xf32>
    %175 = arith.mulf %170, %174 : vector<8x32xf32>
    %176 = vector.extract_strided_slice %5 {offsets = [80, 0], sizes = [8, 128], strides = [1, 1]} : vector<128x128xf32> to vector<8x128xf32>
    %cst_37 = arith.constant dense<0.000000e+00> : vector<8x128xf32>
    %177 = tpu.matmul %175, %6, %cst_37 {dimension_numbers = #tpu.dot_dimension_numbers<[1], [0], [0], [1], [0, 0, 1, 1], [], []>} : vector<8x32xf32>, vector<32x128xf32>, vector<8x128xf32> -> vector<8x128xf32>
    %178 = arith.addf %176, %177 : vector<8x128xf32>
    %179 = math.tanh %178 : vector<8x128xf32>
    %cst_38 = arith.constant 5.000000e-01 : f32
    %180 = vector.broadcast %cst_38 : f32 to vector<8x128xf32>
    %181 = arith.mulf %180, %179 : vector<8x128xf32>
    %cst_39 = arith.constant 5.000000e-01 : f32
    %182 = vector.broadcast %cst_39 : f32 to vector<8x128xf32>
    %183 = arith.addf %181, %182 : vector<8x128xf32>
    %184 = vector.extract_strided_slice %183 {offsets = [0, 0], sizes = [8, 32], strides = [1, 1]} : vector<8x128xf32> to vector<8x32xf32>
    %185 = vector.extract_strided_slice %183 {offsets = [0, 32], sizes = [8, 32], strides = [1, 1]} : vector<8x128xf32> to vector<8x32xf32>
    %186 = vector.extract_strided_slice %179 {offsets = [0, 64], sizes = [8, 32], strides = [1, 1]} : vector<8x128xf32> to vector<8x32xf32>
    %187 = vector.extract_strided_slice %183 {offsets = [0, 96], sizes = [8, 32], strides = [1, 1]} : vector<8x128xf32> to vector<8x32xf32>
    %188 = arith.mulf %185, %173 : vector<8x32xf32>
    %189 = arith.mulf %184, %186 : vector<8x32xf32>
    %190 = arith.addf %188, %189 : vector<8x32xf32>
    %191 = math.tanh %190 : vector<8x32xf32>
    %192 = arith.mulf %187, %191 : vector<8x32xf32>
    %193 = vector.extract_strided_slice %5 {offsets = [88, 0], sizes = [8, 128], strides = [1, 1]} : vector<128x128xf32> to vector<8x128xf32>
    %cst_40 = arith.constant dense<0.000000e+00> : vector<8x128xf32>
    %194 = tpu.matmul %192, %6, %cst_40 {dimension_numbers = #tpu.dot_dimension_numbers<[1], [0], [0], [1], [0, 0, 1, 1], [], []>} : vector<8x32xf32>, vector<32x128xf32>, vector<8x128xf32> -> vector<8x128xf32>
    %195 = arith.addf %193, %194 : vector<8x128xf32>
    %196 = math.tanh %195 : vector<8x128xf32>
    %cst_41 = arith.constant 5.000000e-01 : f32
    %197 = vector.broadcast %cst_41 : f32 to vector<8x128xf32>
    %198 = arith.mulf %197, %196 : vector<8x128xf32>
    %cst_42 = arith.constant 5.000000e-01 : f32
    %199 = vector.broadcast %cst_42 : f32 to vector<8x128xf32>
    %200 = arith.addf %198, %199 : vector<8x128xf32>
    %201 = vector.extract_strided_slice %200 {offsets = [0, 0], sizes = [8, 32], strides = [1, 1]} : vector<8x128xf32> to vector<8x32xf32>
    %202 = vector.extract_strided_slice %200 {offsets = [0, 32], sizes = [8, 32], strides = [1, 1]} : vector<8x128xf32> to vector<8x32xf32>
    %203 = vector.extract_strided_slice %196 {offsets = [0, 64], sizes = [8, 32], strides = [1, 1]} : vector<8x128xf32> to vector<8x32xf32>
    %204 = vector.extract_strided_slice %200 {offsets = [0, 96], sizes = [8, 32], strides = [1, 1]} : vector<8x128xf32> to vector<8x32xf32>
    %205 = arith.mulf %202, %190 : vector<8x32xf32>
    %206 = arith.mulf %201, %203 : vector<8x32xf32>
    %207 = arith.addf %205, %206 : vector<8x32xf32>
    %208 = math.tanh %207 : vector<8x32xf32>
    %209 = arith.mulf %204, %208 : vector<8x32xf32>
    %210 = vector.extract_strided_slice %5 {offsets = [96, 0], sizes = [8, 128], strides = [1, 1]} : vector<128x128xf32> to vector<8x128xf32>
    %cst_43 = arith.constant dense<0.000000e+00> : vector<8x128xf32>
    %211 = tpu.matmul %209, %6, %cst_43 {dimension_numbers = #tpu.dot_dimension_numbers<[1], [0], [0], [1], [0, 0, 1, 1], [], []>} : vector<8x32xf32>, vector<32x128xf32>, vector<8x128xf32> -> vector<8x128xf32>
    %212 = arith.addf %210, %211 : vector<8x128xf32>
    %213 = math.tanh %212 : vector<8x128xf32>
    %cst_44 = arith.constant 5.000000e-01 : f32
    %214 = vector.broadcast %cst_44 : f32 to vector<8x128xf32>
    %215 = arith.mulf %214, %213 : vector<8x128xf32>
    %cst_45 = arith.constant 5.000000e-01 : f32
    %216 = vector.broadcast %cst_45 : f32 to vector<8x128xf32>
    %217 = arith.addf %215, %216 : vector<8x128xf32>
    %218 = vector.extract_strided_slice %217 {offsets = [0, 0], sizes = [8, 32], strides = [1, 1]} : vector<8x128xf32> to vector<8x32xf32>
    %219 = vector.extract_strided_slice %217 {offsets = [0, 32], sizes = [8, 32], strides = [1, 1]} : vector<8x128xf32> to vector<8x32xf32>
    %220 = vector.extract_strided_slice %213 {offsets = [0, 64], sizes = [8, 32], strides = [1, 1]} : vector<8x128xf32> to vector<8x32xf32>
    %221 = vector.extract_strided_slice %217 {offsets = [0, 96], sizes = [8, 32], strides = [1, 1]} : vector<8x128xf32> to vector<8x32xf32>
    %222 = arith.mulf %219, %207 : vector<8x32xf32>
    %223 = arith.mulf %218, %220 : vector<8x32xf32>
    %224 = arith.addf %222, %223 : vector<8x32xf32>
    %225 = math.tanh %224 : vector<8x32xf32>
    %226 = arith.mulf %221, %225 : vector<8x32xf32>
    %227 = vector.extract_strided_slice %5 {offsets = [104, 0], sizes = [8, 128], strides = [1, 1]} : vector<128x128xf32> to vector<8x128xf32>
    %cst_46 = arith.constant dense<0.000000e+00> : vector<8x128xf32>
    %228 = tpu.matmul %226, %6, %cst_46 {dimension_numbers = #tpu.dot_dimension_numbers<[1], [0], [0], [1], [0, 0, 1, 1], [], []>} : vector<8x32xf32>, vector<32x128xf32>, vector<8x128xf32> -> vector<8x128xf32>
    %229 = arith.addf %227, %228 : vector<8x128xf32>
    %230 = math.tanh %229 : vector<8x128xf32>
    %cst_47 = arith.constant 5.000000e-01 : f32
    %231 = vector.broadcast %cst_47 : f32 to vector<8x128xf32>
    %232 = arith.mulf %231, %230 : vector<8x128xf32>
    %cst_48 = arith.constant 5.000000e-01 : f32
    %233 = vector.broadcast %cst_48 : f32 to vector<8x128xf32>
    %234 = arith.addf %232, %233 : vector<8x128xf32>
    %235 = vector.extract_strided_slice %234 {offsets = [0, 0], sizes = [8, 32], strides = [1, 1]} : vector<8x128xf32> to vector<8x32xf32>
    %236 = vector.extract_strided_slice %234 {offsets = [0, 32], sizes = [8, 32], strides = [1, 1]} : vector<8x128xf32> to vector<8x32xf32>
    %237 = vector.extract_strided_slice %230 {offsets = [0, 64], sizes = [8, 32], strides = [1, 1]} : vector<8x128xf32> to vector<8x32xf32>
    %238 = vector.extract_strided_slice %234 {offsets = [0, 96], sizes = [8, 32], strides = [1, 1]} : vector<8x128xf32> to vector<8x32xf32>
    %239 = arith.mulf %236, %224 : vector<8x32xf32>
    %240 = arith.mulf %235, %237 : vector<8x32xf32>
    %241 = arith.addf %239, %240 : vector<8x32xf32>
    %242 = math.tanh %241 : vector<8x32xf32>
    %243 = arith.mulf %238, %242 : vector<8x32xf32>
    %244 = vector.extract_strided_slice %5 {offsets = [112, 0], sizes = [8, 128], strides = [1, 1]} : vector<128x128xf32> to vector<8x128xf32>
    %cst_49 = arith.constant dense<0.000000e+00> : vector<8x128xf32>
    %245 = tpu.matmul %243, %6, %cst_49 {dimension_numbers = #tpu.dot_dimension_numbers<[1], [0], [0], [1], [0, 0, 1, 1], [], []>} : vector<8x32xf32>, vector<32x128xf32>, vector<8x128xf32> -> vector<8x128xf32>
    %246 = arith.addf %244, %245 : vector<8x128xf32>
    %247 = math.tanh %246 : vector<8x128xf32>
    %cst_50 = arith.constant 5.000000e-01 : f32
    %248 = vector.broadcast %cst_50 : f32 to vector<8x128xf32>
    %249 = arith.mulf %248, %247 : vector<8x128xf32>
    %cst_51 = arith.constant 5.000000e-01 : f32
    %250 = vector.broadcast %cst_51 : f32 to vector<8x128xf32>
    %251 = arith.addf %249, %250 : vector<8x128xf32>
    %252 = vector.extract_strided_slice %251 {offsets = [0, 0], sizes = [8, 32], strides = [1, 1]} : vector<8x128xf32> to vector<8x32xf32>
    %253 = vector.extract_strided_slice %251 {offsets = [0, 32], sizes = [8, 32], strides = [1, 1]} : vector<8x128xf32> to vector<8x32xf32>
    %254 = vector.extract_strided_slice %247 {offsets = [0, 64], sizes = [8, 32], strides = [1, 1]} : vector<8x128xf32> to vector<8x32xf32>
    %255 = vector.extract_strided_slice %251 {offsets = [0, 96], sizes = [8, 32], strides = [1, 1]} : vector<8x128xf32> to vector<8x32xf32>
    %256 = arith.mulf %253, %241 : vector<8x32xf32>
    %257 = arith.mulf %252, %254 : vector<8x32xf32>
    %258 = arith.addf %256, %257 : vector<8x32xf32>
    %259 = math.tanh %258 : vector<8x32xf32>
    %260 = arith.mulf %255, %259 : vector<8x32xf32>
    %261 = vector.extract_strided_slice %5 {offsets = [120, 0], sizes = [8, 128], strides = [1, 1]} : vector<128x128xf32> to vector<8x128xf32>
    %cst_52 = arith.constant dense<0.000000e+00> : vector<8x128xf32>
    %262 = tpu.matmul %260, %6, %cst_52 {dimension_numbers = #tpu.dot_dimension_numbers<[1], [0], [0], [1], [0, 0, 1, 1], [], []>} : vector<8x32xf32>, vector<32x128xf32>, vector<8x128xf32> -> vector<8x128xf32>
    %263 = arith.addf %261, %262 : vector<8x128xf32>
    %264 = math.tanh %263 : vector<8x128xf32>
    %cst_53 = arith.constant 5.000000e-01 : f32
    %265 = vector.broadcast %cst_53 : f32 to vector<8x128xf32>
    %266 = arith.mulf %265, %264 : vector<8x128xf32>
    %cst_54 = arith.constant 5.000000e-01 : f32
    %267 = vector.broadcast %cst_54 : f32 to vector<8x128xf32>
    %268 = arith.addf %266, %267 : vector<8x128xf32>
    %269 = vector.extract_strided_slice %268 {offsets = [0, 0], sizes = [8, 32], strides = [1, 1]} : vector<8x128xf32> to vector<8x32xf32>
    %270 = vector.extract_strided_slice %268 {offsets = [0, 32], sizes = [8, 32], strides = [1, 1]} : vector<8x128xf32> to vector<8x32xf32>
    %271 = vector.extract_strided_slice %264 {offsets = [0, 64], sizes = [8, 32], strides = [1, 1]} : vector<8x128xf32> to vector<8x32xf32>
    %272 = vector.extract_strided_slice %268 {offsets = [0, 96], sizes = [8, 32], strides = [1, 1]} : vector<8x128xf32> to vector<8x32xf32>
    %273 = arith.mulf %270, %258 : vector<8x32xf32>
    %274 = arith.mulf %269, %271 : vector<8x32xf32>
    %275 = arith.addf %273, %274 : vector<8x32xf32>
    %276 = math.tanh %275 : vector<8x32xf32>
    %277 = arith.mulf %272, %276 : vector<8x32xf32>
    %c0_55 = arith.constant 0 : index
    %c0_56 = arith.constant 0 : index
    %278 = vector.load %arg4[%c0_55, %c0_56] : memref<32x8xf32, #tpu.memory_space<vmem>>, vector<32x8xf32>
    %cst_57 = arith.constant dense<0.000000e+00> : vector<8x8xf32>
    %279 = tpu.matmul %277, %278, %cst_57 {dimension_numbers = #tpu.dot_dimension_numbers<[1], [0], [0], [1], [0, 0, 1, 1], [], []>} : vector<8x32xf32>, vector<32x8xf32>, vector<8x8xf32> -> vector<8x8xf32>
    %c0_58 = arith.constant 0 : index
    %c0_59 = arith.constant 0 : index
    %280 = vector.load %arg5[%c0_58, %c0_59] : memref<1x8xf32, #tpu.memory_space<vmem>>, vector<1x8xf32>
    %281 = vector.broadcast %280 : vector<1x8xf32> to vector<8x8xf32>
    %282 = arith.addf %279, %281 : vector<8x8xf32>
    %283 = vector.extract_strided_slice %282 {offsets = [0, 0], sizes = [2, 8], strides = [1, 1]} : vector<8x8xf32> to vector<2x8xf32>
    %c0_60 = arith.constant 0 : index
    %c0_61 = arith.constant 0 : index
    %284 = vector.load %arg6[%c0_60, %c0_61] : memref<2x8xf32, #tpu.memory_space<vmem>>, vector<2x8xf32>
    tpu.vector_store %arg6[%c0_60, %c0_61], %283 {strides = array<i32>} : memref<2x8xf32, #tpu.memory_space<vmem>>, vector<2x8xf32>,
    return
  }
}

</mosaic_0001>

<llo_original>
// kernel: lstm_agent_forward.1
$region0: #{lstm_agent_forward.1}
  #allocation0 [shape = 'u32[]', space=smem, size = 0x4, offset = 0x4, fixed_abs, tag = 'smem constant byte address 0x4 - core index']
  #allocation1 [shape = 'u32[144,128]{1,0:T(1,128)}', space=vmem, size = 0x12000, scoped, tag = 'internal scratch']
  %s0 = inlined_call_operand.vmem [shape: f32[128,64], index: 0, kind: input, shape index: {}]
  %s1 = inlined_call_operand.vmem [shape: f32[64,128], index: 1, kind: input, shape index: {}]
  %s2 = inlined_call_operand.vmem [shape: f32[32,128], index: 2, kind: input, shape index: {}]
  %s3 = inlined_call_operand.vmem [shape: f32[1,128], index: 3, kind: input, shape index: {}]
  %s4 = inlined_call_operand.vmem [shape: f32[32,8], index: 4, kind: input, shape index: {}]
  %s5 = inlined_call_operand.vmem [shape: f32[1,8], index: 5, kind: input, shape index: {}]
  %s6 = inlined_call_operand.hbm [shape: f32[2,8], index: 6, kind: output, shape index: {}]
  %s7 = sld [smem:[#allocation0]]
  $region34: #{lstm_agent_forward.1} parent=0
    _
  %s9 = ssub.s32 1, %s7
  %s10 = scalar_select 0, %s9, %s7
  $region1: #{lstm_agent_forward.1} parent=0
    #allocation2 [shape = 'u8[1024]{0}', space=vmem, size = 0x400, scoped, tag = 'output window, operand 0, single buffered']
    #allocation3 [shape = 's32[1]{0}', space=sflag, size = 0x4, scoped, tag = 'scoped memory for lstm_agent_forward.1']
    %11 = vsyncpa [#allocation3], 0
    // Predicated region
    $region2: #{lstm_agent_forward.1} parent=1 // pred_check
      _
    $region3: #{lstm_agent_forward.1} parent=1 // pred_check_branch
      %13 = sbr.rel (0) target = $region5
    $region4: #{lstm_agent_forward.1} parent=1 // pred_region
      _
    $region5: #{lstm_agent_forward.1} parent=1 // pred_fallthru
      _
    // Predicated region
    $region6: #{lstm_agent_forward.1} parent=1 // pred_check
      _
    $region7: #{lstm_agent_forward.1} parent=1 // pred_check_branch
      %15 = sbr.rel (0) target = $region9
    $region8: #{lstm_agent_forward.1} parent=1 // pred_region
      _
    $region9: #{lstm_agent_forward.1} parent=1 // pred_fallthru
      _
    // Predicated region
    $region10: #{lstm_agent_forward.1} parent=1 // pred_check
      _
    $region11: #{lstm_agent_forward.1} parent=1 // pred_check_branch
      %17 = sbr.rel (0) target = $region13
    $region12: #{lstm_agent_forward.1} parent=1 // pred_region
      _
    $region13: #{lstm_agent_forward.1} parent=1 // pred_fallthru
      _
    // Predicated region
    $region14: #{lstm_agent_forward.1} parent=1 // pred_check
      _
    $region15: #{lstm_agent_forward.1} parent=1 // pred_check_branch
      %19 = sbr.rel (0) target = $region17
    $region16: #{lstm_agent_forward.1} parent=1 // pred_region
      _
    $region17: #{lstm_agent_forward.1} parent=1 // pred_fallthru
      _
    // Predicated region
    $region18: #{lstm_agent_forward.1} parent=1 // pred_check
      _
    $region19: #{lstm_agent_forward.1} parent=1 // pred_check_branch
      %21 = sbr.rel (0) target = $region21
    $region20: #{lstm_agent_forward.1} parent=1 // pred_region
      _
    $region21: #{lstm_agent_forward.1} parent=1 // pred_fallthru
      _
    // Predicated region
    $region22: #{lstm_agent_forward.1} parent=1 // pred_check
      _
    $region23: #{lstm_agent_forward.1} parent=1 // pred_check_branch
      %23 = sbr.rel (0) target = $region25
    $region24: #{lstm_agent_forward.1} parent=1 // pred_region
      _
    $region25: #{lstm_agent_forward.1} parent=1 // pred_fallthru
      _
    %v24 = vld [vmem:[%s0] sm:$0xff]
    %v25 = vld [vmem:[%s0 + $0x8] sm:$0xff]
    %v26 = vld [vmem:[%s0 + $0x10] sm:$0xff]
    %v27 = vld [vmem:[%s0 + $0x18] sm:$0xff]
    %v28 = vld [vmem:[%s0 + $0x20] sm:$0xff]
    %v29 = vld [vmem:[%s0 + $0x28] sm:$0xff]
    %v30 = vld [vmem:[%s0 + $0x30] sm:$0xff]
    %v31 = vld [vmem:[%s0 + $0x38] sm:$0xff]
    %v32 = vld [vmem:[%s0 + $0x40] sm:$0xff]
    %v33 = vld [vmem:[%s0 + $0x48] sm:$0xff]
    %v34 = vld [vmem:[%s0 + $0x50] sm:$0xff]
    %v35 = vld [vmem:[%s0 + $0x58] sm:$0xff]
    %v36 = vld [vmem:[%s0 + $0x60] sm:$0xff]
    %v37 = vld [vmem:[%s0 + $0x68] sm:$0xff]
    %v38 = vld [vmem:[%s0 + $0x70] sm:$0xff]
    %v39 = vld [vmem:[%s0 + $0x78] sm:$0xff]
    %v40 = vld [vmem:[%s1] sm:$0xff]
    %v41 = vld [vmem:[%s1 + $0x8] sm:$0xff]
    %v42 = vld [vmem:[%s1 + $0x10] sm:$0xff]
    %v43 = vld [vmem:[%s1 + $0x18] sm:$0xff]
    %v44 = vld [vmem:[%s1 + $0x20] sm:$0xff]
    %v45 = vld [vmem:[%s1 + $0x28] sm:$0xff]
    %v46 = vld [vmem:[%s1 + $0x30] sm:$0xff]
    %v47 = vld [vmem:[%s1 + $0x38] sm:$0xff]
    %v48 = vld [vmem:[%s3] sm:$0x1]
    %v50 = vlaneseq
    %v51 = vshrl.u32 %v50, 7
    %v52 = vsub.s32 0, %v51
    %v53 = vrot.slane %v48, %v52
    %vm55 = vcmask 523264
    %v57 = vsel %vm55, %v24, 0
    %v60 = vsel %vm55, %v25, 0
    %v63 = vsel %vm55, %v26, 0
    %v66 = vsel %vm55, %v27, 0
    %v69 = vsel %vm55, %v28, 0
    %v72 = vsel %vm55, %v29, 0
    %v75 = vsel %vm55, %v30, 0
    %v78 = vsel %vm55, %v31, 0
    %v81 = vsel %vm55, %v32, 0
    %v84 = vsel %vm55, %v33, 0
    %v87 = vsel %vm55, %v34, 0
    %v90 = vsel %vm55, %v35, 0
    %v93 = vsel %vm55, %v36, 0
    %v96 = vsel %vm55, %v37, 0
    %v99 = vsel %vm55, %v38, 0
    %v102 = vsel %vm55, %v39, 0
    %104 = vmatprep.subr.mxu0 0.0
    %105 = vmatpush1.msra.mxu0 %v40
    %106 = vmatprep.subr.mxu0 0.0
    %107 = vmatpush1.msra.mxu0 %v41
    %108 = vmatprep.subr.mxu0 0.0
    %109 = vmatpush1.msra.mxu0 %v42
    %110 = vmatprep.subr.mxu0 0.0
    %111 = vmatpush1.msra.mxu0 %v43
    %112 = vmatprep.subr.mxu0 0.0
    %113 = vmatpush1.msra.mxu0 %v44
    %114 = vmatprep.subr.mxu0 0.0
    %115 = vmatpush1.msra.mxu0 %v45
    %116 = vmatprep.subr.mxu0 0.0
    %117 = vmatpush1.msra.mxu0 %v46
    %118 = vmatprep.subr.mxu0 0.0
    %119 = vmatpush1.msra.mxu0 %v47
    %120 = vmatprep.subr.mxu0 0.0
    %121 = vmatpush1.msra.mxu0 0.0
    %122 = vmatprep.subr.mxu0 0.0
    %123 = vmatpush1.msra.mxu0 0.0
    %124 = vmatprep.subr.mxu0 0.0
    %125 = vmatpush1.msra.mxu0 0.0
    %126 = vmatprep.subr.mxu0 0.0
    %127 = vmatpush1.msra.mxu0 0.0
    %128 = vmatprep.subr.mxu0 0.0
    %129 = vmatpush1.msra.mxu0 0.0
    %130 = vmatprep.subr.mxu0 0.0
    %131 = vmatpush1.msra.mxu0 0.0
    %132 = vmatprep.subr.mxu0 0.0
    %133 = vmatpush1.msra.mxu0 0.0
    %134 = vmatprep.subr.mxu0 0.0
    %135 = vmatpush1.msra.mxu0 0.0
    %136 = vmatprep.subr.mxu0 0.0
    %137 = vmatpush1.msra.mxu0 0.0
    %138 = vmatprep.subr.mxu0 0.0
    %139 = vmatpush1.msra.mxu0 0.0
    %140 = vmatprep.subr.mxu0 0.0
    %141 = vmatpush1.msra.mxu0 0.0
    %142 = vmatprep.subr.mxu0 0.0
    %143 = vmatpush1.msra.mxu0 0.0
    %144 = vmatprep.subr.mxu0 0.0
    %145 = vmatpush1.msra.mxu0 0.0
    %146 = vmatprep.subr.mxu0 0.0
    %147 = vmatpush1.msra.mxu0 0.0
    %148 = vmatprep.subr.mxu0 0.0
    %149 = vmatpush1.msra.mxu0 0.0
    %150 = vmatprep.subr.mxu0 0.0
    %151 = vmatpush1.msra.mxu0 0.0
    %152 = vmatprep.subr.mxu0 0.0
    %153 = vmatpush1.msra.mxu0 0.0
    %154 = vmatprep.subr.mxu0 0.0
    %155 = vmatpush1.msra.mxu0 0.0
    %156 = vmatprep.subr.mxu0 0.0
    %157 = vmatpush1.msra.mxu0 0.0
    %158 = vmatprep.subr.mxu0 0.0
    %159 = vmatpush1.msra.mxu0 0.0
    %160 = vmatprep.subr.mxu0 0.0
    %161 = vmatpush1.msra.mxu0 0.0
    %162 = vmatprep.subr.mxu0 0.0
    %163 = vmatpush1.msra.mxu0 0.0
    %164 = vmatprep.subr.mxu0 0.0
    %165 = vmatpush1.msra.mxu0 0.0
    %166 = vmatprep.subr.mxu0 0.0
    %167 = vmatpush1.msra.mxu0 0.0
    %168 = vmatprep.mubr.f32.mxu0 0.0
    %169 = vmatmul.mubr.f32.gmra.mrb[0].mxu0 %v57
    %v170 = vpop.f32.mrb[0].mxu0
    %v171 = vadd.f32 %v53, %v170
    %v172 = vpop.f32.mrb[0].mxu0
    %173 = vmatprep.mubr.f32.mxu0 0.0
    %174 = vmatmul.mubr.f32.gmra.mrb[0].mxu0 %v60
    %v175 = vpop.f32.mrb[0].mxu0
    %v176 = vadd.f32 %v53, %v175
    %v177 = vpop.f32.mrb[0].mxu0
    %178 = vmatprep.mubr.f32.mxu0 0.0
    %179 = vmatmul.mubr.f32.gmra.mrb[0].mxu0 %v63
    %v180 = vpop.f32.mrb[0].mxu0
    %v181 = vadd.f32 %v53, %v180
    %v182 = vpop.f32.mrb[0].mxu0
    %183 = vmatprep.mubr.f32.mxu0 0.0
    %184 = vmatmul.mubr.f32.gmra.mrb[0].mxu0 %v66
    %v185 = vpop.f32.mrb[0].mxu0
    %v186 = vadd.f32 %v53, %v185
    %v187 = vpop.f32.mrb[0].mxu0
    %188 = vmatprep.mubr.f32.mxu0 0.0
    %189 = vmatmul.mubr.f32.gmra.mrb[0].mxu0 %v69
    %v190 = vpop.f32.mrb[0].mxu0
    %v191 = vadd.f32 %v53, %v190
    %v192 = vpop.f32.mrb[0].mxu0
    %193 = vmatprep.mubr.f32.mxu0 0.0
    %194 = vmatmul.mubr.f32.gmra.mrb[0].mxu0 %v72
    %v195 = vpop.f32.mrb[0].mxu0
    %v196 = vadd.f32 %v53, %v195
    %v197 = vpop.f32.mrb[0].mxu0
    %198 = vmatprep.mubr.f32.mxu0 0.0
    %199 = vmatmul.mubr.f32.gmra.mrb[0].mxu0 %v75
    %v200 = vpop.f32.mrb[0].mxu0
    %v201 = vadd.f32 %v53, %v200
    %v202 = vpop.f32.mrb[0].mxu0
    %203 = vmatprep.mubr.f32.mxu0 0.0
    %204 = vmatmul.mubr.f32.gmra.mrb[0].mxu0 %v78
    %v205 = vpop.f32.mrb[0].mxu0
    %v206 = vadd.f32 %v53, %v205
    %v207 = vpop.f32.mrb[0].mxu0
    %208 = vmatprep.mubr.f32.mxu0 0.0
    %209 = vmatmul.mubr.f32.gmra.mrb[0].mxu0 %v81
    %v210 = vpop.f32.mrb[0].mxu0
    %v211 = vadd.f32 %v53, %v210
    %v212 = vpop.f32.mrb[0].mxu0
    %213 = vmatprep.mubr.f32.mxu0 0.0
    %214 = vmatmul.mubr.f32.gmra.mrb[0].mxu0 %v84
    %v215 = vpop.f32.mrb[0].mxu0
    %v216 = vadd.f32 %v53, %v215
    %v217 = vpop.f32.mrb[0].mxu0
    %218 = vmatprep.mubr.f32.mxu0 0.0
    %219 = vmatmul.mubr.f32.gmra.mrb[0].mxu0 %v87
    %v220 = vpop.f32.mrb[0].mxu0
    %v221 = vadd.f32 %v53, %v220
    %v222 = vpop.f32.mrb[0].mxu0
    %223 = vmatprep.mubr.f32.mxu0 0.0
    %224 = vmatmul.mubr.f32.gmra.mrb[0].mxu0 %v90
    %v225 = vpop.f32.mrb[0].mxu0
    %v226 = vadd.f32 %v53, %v225
    %v227 = vpop.f32.mrb[0].mxu0
    %228 = vmatprep.mubr.f32.mxu0 0.0
    %229 = vmatmul.mubr.f32.gmra.mrb[0].mxu0 %v93
    %v230 = vpop.f32.mrb[0].mxu0
    %v231 = vadd.f32 %v53, %v230
    %v232 = vpop.f32.mrb[0].mxu0
    %233 = vmatprep.mubr.f32.mxu0 0.0
    %234 = vmatmul.mubr.f32.gmra.mrb[0].mxu0 %v96
    %v235 = vpop.f32.mrb[0].mxu0
    %v236 = vadd.f32 %v53, %v235
    %v237 = vpop.f32.mrb[0].mxu0
    %238 = vmatprep.mubr.f32.mxu0 0.0
    %239 = vmatmul.mubr.f32.gmra.mrb[0].mxu0 %v99
    %v240 = vpop.f32.mrb[0].mxu0
    %v241 = vadd.f32 %v53, %v240
    %v242 = vpop.f32.mrb[0].mxu0
    %243 = vmatprep.mubr.f32.mxu0 0.0
    %244 = vmatmul.mubr.f32.gmra.mrb[0].mxu0 %v102
    %v245 = vpop.f32.mrb[0].mxu0
    %v246 = vadd.f32 %v53, %v245
    %v247 = vpop.f32.mrb[0].mxu0
    %248 = vdwg.mxu0
    %v249 = vld [vmem:[%s2] sm:$0xff]
    %v250 = vld [vmem:[%s2 + $0x8] sm:$0xff]
    %v251 = vld [vmem:[%s2 + $0x10] sm:$0xff]
    %v252 = vld [vmem:[%s2 + $0x18] sm:$0xff]
    %v253 = vtanh.pop %v171
    %v254 = vmul.f32 %v253, 0.5
    %v255 = vadd.f32 %v254, 0.5
    %v256 = vmul.f32 %v255, 0.0
    %258 = vrot.lane.b32.xlu0 %v253, 64
    %v259 = vpop.permute.xlu0 %258
    %v261 = vmul.f32 %v255, %v259
    %263 = vrot.lane.b32.xlu0 %v261, 32
    %v264 = vpop.permute.xlu0 %263
    %v266 = vadd.f32 %v256, %v264
    %v267 = vtanh.pop %v266
    %269 = vrot.lane.b32.xlu0 %v267, 64
    %v270 = vpop.permute.xlu0 %269
    %v272 = vmul.f32 %v255, %v270
    %274 = vrot.lane.b32.xlu0 %v272, 32
    %v275 = vpop.permute.xlu0 %274
    %vm276 = vcmask 261120
    %v277 = vsel %vm276, %v275, 0
    %279 = vmatprep.subr.mxu0 0.0
    %280 = vmatpush1.msra.mxu0 %v249
    %281 = vmatprep.subr.mxu0 0.0
    %282 = vmatpush1.msra.mxu0 %v250
    %283 = vmatprep.subr.mxu0 0.0
    %284 = vmatpush1.msra.mxu0 %v251
    %285 = vmatprep.subr.mxu0 0.0
    %286 = vmatpush1.msra.mxu0 %v252
    %287 = vmatprep.subr.mxu0 0.0
    %288 = vmatpush1.msra.mxu0 0.0
    %289 = vmatprep.subr.mxu0 0.0
    %290 = vmatpush1.msra.mxu0 0.0
    %291 = vmatprep.subr.mxu0 0.0
    %292 = vmatpush1.msra.mxu0 0.0
    %293 = vmatprep.subr.mxu0 0.0
    %294 = vmatpush1.msra.mxu0 0.0
    %295 = vmatprep.subr.mxu0 0.0
    %296 = vmatpush1.msra.mxu0 0.0
    %297 = vmatprep.subr.mxu0 0.0
    %298 = vmatpush1.msra.mxu0 0.0
    %299 = vmatprep.subr.mxu0 0.0
    %300 = vmatpush1.msra.mxu0 0.0
    %301 = vmatprep.subr.mxu0 0.0
    %302 = vmatpush1.msra.mxu0 0.0
    %303 = vmatprep.subr.mxu0 0.0
    %304 = vmatpush1.msra.mxu0 0.0
    %305 = vmatprep.subr.mxu0 0.0
    %306 = vmatpush1.msra.mxu0 0.0
    %307 = vmatprep.subr.mxu0 0.0
    %308 = vmatpush1.msra.mxu0 0.0
    %309 = vmatprep.subr.mxu0 0.0
    %310 = vmatpush1.msra.mxu0 0.0
    %311 = vmatprep.subr.mxu0 0.0
    %312 = vmatpush1.msra.mxu0 0.0
    %313 = vmatprep.subr.mxu0 0.0
    %314 = vmatpush1.msra.mxu0 0.0
    %315 = vmatprep.subr.mxu0 0.0
    %316 = vmatpush1.msra.mxu0 0.0
    %317 = vmatprep.subr.mxu0 0.0
    %318 = vmatpush1.msra.mxu0 0.0
    %319 = vmatprep.subr.mxu0 0.0
    %320 = vmatpush1.msra.mxu0 0.0
    %321 = vmatprep.subr.mxu0 0.0
    %322 = vmatpush1.msra.mxu0 0.0
    %323 = vmatprep.subr.mxu0 0.0
    %324 = vmatpush1.msra.mxu0 0.0
    %325 = vmatprep.subr.mxu0 0.0
    %326 = vmatpush1.msra.mxu0 0.0
    %327 = vmatprep.subr.mxu0 0.0
    %328 = vmatpush1.msra.mxu0 0.0
    %329 = vmatprep.subr.mxu0 0.0
    %330 = vmatpush1.msra.mxu0 0.0
    %331 = vmatprep.subr.mxu0 0.0
    %332 = vmatpush1.msra.mxu0 0.0
    %333 = vmatprep.subr.mxu0 0.0
    %334 = vmatpush1.msra.mxu0 0.0
    %335 = vmatprep.subr.mxu0 0.0
    %336 = vmatpush1.msra.mxu0 0.0
    %337 = vmatprep.subr.mxu0 0.0
    %338 = vmatpush1.msra.mxu0 0.0
    %339 = vmatprep.subr.mxu0 0.0
    %340 = vmatpush1.msra.mxu0 0.0
    %341 = vmatprep.subr.mxu0 0.0
    %342 = vmatpush1.msra.mxu0 0.0
    %343 = vmatprep.mubr.f32.mxu0 0.0
    %344 = vmatmul.mubr.f32.gmra.mrb[0].mxu0 %v277
    %v345 = vpop.f32.mrb[0].mxu0
    %v346 = vadd.f32 0.0, %v345
    %v347 = vpop.f32.mrb[0].mxu0
    %348 = vdwg.mxu0
    %v349 = vadd.f32 %v176, %v346
    %v350 = vtanh.pop %v349
    %v351 = vmul.f32 %v350, 0.5
    %v352 = vadd.f32 %v351, 0.5
    %v353 = vmul.f32 %v352, %v266
    %355 = vrot.lane.b32.xlu0 %v350, 64
    %v356 = vpop.permute.xlu0 %355
    %v358 = vmul.f32 %v352, %v356
    %360 = vrot.lane.b32.xlu0 %v358, 32
    %v361 = vpop.permute.xlu0 %360
    %v363 = vadd.f32 %v353, %v361
    %v364 = vtanh.pop %v363
    %366 = vrot.lane.b32.xlu0 %v364, 64
    %v367 = vpop.permute.xlu0 %366
    %v369 = vmul.f32 %v352, %v367
    %371 = vrot.lane.b32.xlu0 %v369, 32
    %v372 = vpop.permute.xlu0 %371
    %v373 = vsel %vm276, %v372, 0
    %375 = vmatprep.subr.mxu0 0.0
    %376 = vmatpush1.msra.mxu0 %v249
    %377 = vmatprep.subr.mxu0 0.0
    %378 = vmatpush1.msra.mxu0 %v250
    %379 = vmatprep.subr.mxu0 0.0
    %380 = vmatpush1.msra.mxu0 %v251
    %381 = vmatprep.subr.mxu0 0.0
    %382 = vmatpush1.msra.mxu0 %v252
    %383 = vmatprep.subr.mxu0 0.0
    %384 = vmatpush1.msra.mxu0 0.0
    %385 = vmatprep.subr.mxu0 0.0
    %386 = vmatpush1.msra.mxu0 0.0
    %387 = vmatprep.subr.mxu0 0.0
    %388 = vmatpush1.msra.mxu0 0.0
    %389 = vmatprep.subr.mxu0 0.0
    %390 = vmatpush1.msra.mxu0 0.0
    %391 = vmatprep.subr.mxu0 0.0
    %392 = vmatpush1.msra.mxu0 0.0
    %393 = vmatprep.subr.mxu0 0.0
    %394 = vmatpush1.msra.mxu0 0.0
    %395 = vmatprep.subr.mxu0 0.0
    %396 = vmatpush1.msra.mxu0 0.0
    %397 = vmatprep.subr.mxu0 0.0
    %398 = vmatpush1.msra.mxu0 0.0
    %399 = vmatprep.subr.mxu0 0.0
    %400 = vmatpush1.msra.mxu0 0.0
    %401 = vmatprep.subr.mxu0 0.0
    %402 = vmatpush1.msra.mxu0 0.0
    %403 = vmatprep.subr.mxu0 0.0
    %404 = vmatpush1.msra.mxu0 0.0
    %405 = vmatprep.subr.mxu0 0.0
    %406 = vmatpush1.msra.mxu0 0.0
    %407 = vmatprep.subr.mxu0 0.0
    %408 = vmatpush1.msra.mxu0 0.0
    %409 = vmatprep.subr.mxu0 0.0
    %410 = vmatpush1.msra.mxu0 0.0
    %411 = vmatprep.subr.mxu0 0.0
    %412 = vmatpush1.msra.mxu0 0.0
    %413 = vmatprep.subr.mxu0 0.0
    %414 = vmatpush1.msra.mxu0 0.0
    %415 = vmatprep.subr.mxu0 0.0
    %416 = vmatpush1.msra.mxu0 0.0
    %417 = vmatprep.subr.mxu0 0.0
    %418 = vmatpush1.msra.mxu0 0.0
    %419 = vmatprep.subr.mxu0 0.0
    %420 = vmatpush1.msra.mxu0 0.0
    %421 = vmatprep.subr.mxu0 0.0
    %422 = vmatpush1.msra.mxu0 0.0
    %423 = vmatprep.subr.mxu0 0.0
    %424 = vmatpush1.msra.mxu0 0.0
    %425 = vmatprep.subr.mxu0 0.0
    %426 = vmatpush1.msra.mxu0 0.0
    %427 = vmatprep.subr.mxu0 0.0
    %428 = vmatpush1.msra.mxu0 0.0
    %429 = vmatprep.subr.mxu0 0.0
    %430 = vmatpush1.msra.mxu0 0.0
    %431 = vmatprep.subr.mxu0 0.0
    %432 = vmatpush1.msra.mxu0 0.0
    %433 = vmatprep.subr.mxu0 0.0
    %434 = vmatpush1.msra.mxu0 0.0
    %435 = vmatprep.subr.mxu0 0.0
    %436 = vmatpush1.msra.mxu0 0.0
    %437 = vmatprep.subr.mxu0 0.0
    %438 = vmatpush1.msra.mxu0 0.0
    %439 = vmatprep.mubr.f32.mxu0 0.0
    %440 = vmatmul.mubr.f32.gmra.mrb[0].mxu0 %v373
    %v441 = vpop.f32.mrb[0].mxu0
    %v442 = vadd.f32 0.0, %v441
    %v443 = vpop.f32.mrb[0].mxu0
    %444 = vdwg.mxu0
    %v445 = vadd.f32 %v181, %v442
    %v446 = vtanh.pop %v445
    %v447 = vmul.f32 %v446, 0.5
    %v448 = vadd.f32 %v447, 0.5
    %v449 = vmul.f32 %v448, %v363
    %451 = vrot.lane.b32.xlu0 %v446, 64
    %v452 = vpop.permute.xlu0 %451
    %v454 = vmul.f32 %v448, %v452
    %456 = vrot.lane.b32.xlu0 %v454, 32
    %v457 = vpop.permute.xlu0 %456
    %v459 = vadd.f32 %v449, %v457
    %v460 = vtanh.pop %v459
    %462 = vrot.lane.b32.xlu0 %v460, 64
    %v463 = vpop.permute.xlu0 %462
    %v465 = vmul.f32 %v448, %v463
    %467 = vrot.lane.b32.xlu0 %v465, 32
    %v468 = vpop.permute.xlu0 %467
    %v469 = vsel %vm276, %v468, 0
    %471 = vmatprep.subr.mxu0 0.0
    %472 = vmatpush1.msra.mxu0 %v249
    %473 = vmatprep.subr.mxu0 0.0
    %474 = vmatpush1.msra.mxu0 %v250
    %475 = vmatprep.subr.mxu0 0.0
    %476 = vmatpush1.msra.mxu0 %v251
    %477 = vmatprep.subr.mxu0 0.0
    %478 = vmatpush1.msra.mxu0 %v252
    %479 = vmatprep.subr.mxu0 0.0
    %480 = vmatpush1.msra.mxu0 0.0
    %481 = vmatprep.subr.mxu0 0.0
    %482 = vmatpush1.msra.mxu0 0.0
    %483 = vmatprep.subr.mxu0 0.0
    %484 = vmatpush1.msra.mxu0 0.0
    %485 = vmatprep.subr.mxu0 0.0
    %486 = vmatpush1.msra.mxu0 0.0
    %487 = vmatprep.subr.mxu0 0.0
    %488 = vmatpush1.msra.mxu0 0.0
    %489 = vmatprep.subr.mxu0 0.0
    %490 = vmatpush1.msra.mxu0 0.0
    %491 = vmatprep.subr.mxu0 0.0
    %492 = vmatpush1.msra.mxu0 0.0
    %493 = vmatprep.subr.mxu0 0.0
    %494 = vmatpush1.msra.mxu0 0.0
    %495 = vmatprep.subr.mxu0 0.0
    %496 = vmatpush1.msra.mxu0 0.0
    %497 = vmatprep.subr.mxu0 0.0
    %498 = vmatpush1.msra.mxu0 0.0
    %499 = vmatprep.subr.mxu0 0.0
    %500 = vmatpush1.msra.mxu0 0.0
    %501 = vmatprep.subr.mxu0 0.0
    %502 = vmatpush1.msra.mxu0 0.0
    %503 = vmatprep.subr.mxu0 0.0
    %504 = vmatpush1.msra.mxu0 0.0
    %505 = vmatprep.subr.mxu0 0.0
    %506 = vmatpush1.msra.mxu0 0.0
    %507 = vmatprep.subr.mxu0 0.0
    %508 = vmatpush1.msra.mxu0 0.0
    %509 = vmatprep.subr.mxu0 0.0
    %510 = vmatpush1.msra.mxu0 0.0
    %511 = vmatprep.subr.mxu0 0.0
    %512 = vmatpush1.msra.mxu0 0.0
    %513 = vmatprep.subr.mxu0 0.0
    %514 = vmatpush1.msra.mxu0 0.0
    %515 = vmatprep.subr.mxu0 0.0
    %516 = vmatpush1.msra.mxu0 0.0
    %517 = vmatprep.subr.mxu0 0.0
    %518 = vmatpush1.msra.mxu0 0.0
    %519 = vmatprep.subr.mxu0 0.0
    %520 = vmatpush1.msra.mxu0 0.0
    %521 = vmatprep.subr.mxu0 0.0
    %522 = vmatpush1.msra.mxu0 0.0
    %523 = vmatprep.subr.mxu0 0.0
    %524 = vmatpush1.msra.mxu0 0.0
    %525 = vmatprep.subr.mxu0 0.0
    %526 = vmatpush1.msra.mxu0 0.0
    %527 = vmatprep.subr.mxu0 0.0
    %528 = vmatpush1.msra.mxu0 0.0
    %529 = vmatprep.subr.mxu0 0.0
    %530 = vmatpush1.msra.mxu0 0.0
    %531 = vmatprep.subr.mxu0 0.0
    %532 = vmatpush1.msra.mxu0 0.0
    %533 = vmatprep.subr.mxu0 0.0
    %534 = vmatpush1.msra.mxu0 0.0
    %535 = vmatprep.mubr.f32.mxu0 0.0
    %536 = vmatmul.mubr.f32.gmra.mrb[0].mxu0 %v469
    %v537 = vpop.f32.mrb[0].mxu0
    %v538 = vadd.f32 0.0, %v537
    %v539 = vpop.f32.mrb[0].mxu0
    %540 = vdwg.mxu0
    %v541 = vadd.f32 %v186, %v538
    %v542 = vtanh.pop %v541
    %v543 = vmul.f32 %v542, 0.5
    %v544 = vadd.f32 %v543, 0.5
    %v545 = vmul.f32 %v544, %v459
    %547 = vrot.lane.b32.xlu0 %v542, 64
    %v548 = vpop.permute.xlu0 %547
    %v550 = vmul.f32 %v544, %v548
    %552 = vrot.lane.b32.xlu0 %v550, 32
    %v553 = vpop.permute.xlu0 %552
    %v555 = vadd.f32 %v545, %v553
    %v556 = vtanh.pop %v555
    %558 = vrot.lane.b32.xlu0 %v556, 64
    %v559 = vpop.permute.xlu0 %558
    %v561 = vmul.f32 %v544, %v559
    %563 = vrot.lane.b32.xlu0 %v561, 32
    %v564 = vpop.permute.xlu0 %563
    %v565 = vsel %vm276, %v564, 0
    %567 = vmatprep.subr.mxu0 0.0
    %568 = vmatpush1.msra.mxu0 %v249
    %569 = vmatprep.subr.mxu0 0.0
    %570 = vmatpush1.msra.mxu0 %v250
    %571 = vmatprep.subr.mxu0 0.0
    %572 = vmatpush1.msra.mxu0 %v251
    %573 = vmatprep.subr.mxu0 0.0
    %574 = vmatpush1.msra.mxu0 %v252
    %575 = vmatprep.subr.mxu0 0.0
    %576 = vmatpush1.msra.mxu0 0.0
    %577 = vmatprep.subr.mxu0 0.0
    %578 = vmatpush1.msra.mxu0 0.0
    %579 = vmatprep.subr.mxu0 0.0
    %580 = vmatpush1.msra.mxu0 0.0
    %581 = vmatprep.subr.mxu0 0.0
    %582 = vmatpush1.msra.mxu0 0.0
    %583 = vmatprep.subr.mxu0 0.0
    %584 = vmatpush1.msra.mxu0 0.0
    %585 = vmatprep.subr.mxu0 0.0
    %586 = vmatpush1.msra.mxu0 0.0
    %587 = vmatprep.subr.mxu0 0.0
    %588 = vmatpush1.msra.mxu0 0.0
    %589 = vmatprep.subr.mxu0 0.0
    %590 = vmatpush1.msra.mxu0 0.0
    %591 = vmatprep.subr.mxu0 0.0
    %592 = vmatpush1.msra.mxu0 0.0
    %593 = vmatprep.subr.mxu0 0.0
    %594 = vmatpush1.msra.mxu0 0.0
    %595 = vmatprep.subr.mxu0 0.0
    %596 = vmatpush1.msra.mxu0 0.0
    %597 = vmatprep.subr.mxu0 0.0
    %598 = vmatpush1.msra.mxu0 0.0
    %599 = vmatprep.subr.mxu0 0.0
    %600 = vmatpush1.msra.mxu0 0.0
    %601 = vmatprep.subr.mxu0 0.0
    %602 = vmatpush1.msra.mxu0 0.0
    %603 = vmatprep.subr.mxu0 0.0
    %604 = vmatpush1.msra.mxu0 0.0
    %605 = vmatprep.subr.mxu0 0.0
    %606 = vmatpush1.msra.mxu0 0.0
    %607 = vmatprep.subr.mxu0 0.0
    %608 = vmatpush1.msra.mxu0 0.0
    %609 = vmatprep.subr.mxu0 0.0
    %610 = vmatpush1.msra.mxu0 0.0
    %611 = vmatprep.subr.mxu0 0.0
    %612 = vmatpush1.msra.mxu0 0.0
    %613 = vmatprep.subr.mxu0 0.0
    %614 = vmatpush1.msra.mxu0 0.0
    %615 = vmatprep.subr.mxu0 0.0
    %616 = vmatpush1.msra.mxu0 0.0
    %617 = vmatprep.subr.mxu0 0.0
    %618 = vmatpush1.msra.mxu0 0.0
    %619 = vmatprep.subr.mxu0 0.0
    %620 = vmatpush1.msra.mxu0 0.0
    %621 = vmatprep.subr.mxu0 0.0
    %622 = vmatpush1.msra.mxu0 0.0
    %623 = vmatprep.subr.mxu0 0.0
    %624 = vmatpush1.msra.mxu0 0.0
    %625 = vmatprep.subr.mxu0 0.0
    %626 = vmatpush1.msra.mxu0 0.0
    %627 = vmatprep.subr.mxu0 0.0
    %628 = vmatpush1.msra.mxu0 0.0
    %629 = vmatprep.subr.mxu0 0.0
    %630 = vmatpush1.msra.mxu0 0.0
    %631 = vmatprep.mubr.f32.mxu0 0.0
    %632 = vmatmul.mubr.f32.gmra.mrb[0].mxu0 %v565
    %v633 = vpop.f32.mrb[0].mxu0
    %v634 = vadd.f32 0.0, %v633
    %v635 = vpop.f32.mrb[0].mxu0
    %636 = vdwg.mxu0
    %v637 = vadd.f32 %v191, %v634
    %v638 = vtanh.pop %v637
    %v639 = vmul.f32 %v638, 0.5
    %v640 = vadd.f32 %v639, 0.5
    %v641 = vmul.f32 %v640, %v555
    %643 = vrot.lane.b32.xlu0 %v638, 64
    %v644 = vpop.permute.xlu0 %643
    %v646 = vmul.f32 %v640, %v644
    %648 = vrot.lane.b32.xlu0 %v646, 32
    %v649 = vpop.permute.xlu0 %648
    %v651 = vadd.f32 %v641, %v649
    %v652 = vtanh.pop %v651
    %654 = vrot.lane.b32.xlu0 %v652, 64
    %v655 = vpop.permute.xlu0 %654
    %v657 = vmul.f32 %v640, %v655
    %659 = vrot.lane.b32.xlu0 %v657, 32
    %v660 = vpop.permute.xlu0 %659
    %v661 = vsel %vm276, %v660, 0
    %663 = vmatprep.subr.mxu0 0.0
    %664 = vmatpush1.msra.mxu0 %v249
    %665 = vmatprep.subr.mxu0 0.0
    %666 = vmatpush1.msra.mxu0 %v250
    %667 = vmatprep.subr.mxu0 0.0
    %668 = vmatpush1.msra.mxu0 %v251
    %669 = vmatprep.subr.mxu0 0.0
    %670 = vmatpush1.msra.mxu0 %v252
    %671 = vmatprep.subr.mxu0 0.0
    %672 = vmatpush1.msra.mxu0 0.0
    %673 = vmatprep.subr.mxu0 0.0
    %674 = vmatpush1.msra.mxu0 0.0
    %675 = vmatprep.subr.mxu0 0.0
    %676 = vmatpush1.msra.mxu0 0.0
    %677 = vmatprep.subr.mxu0 0.0
    %678 = vmatpush1.msra.mxu0 0.0
    %679 = vmatprep.subr.mxu0 0.0
    %680 = vmatpush1.msra.mxu0 0.0
    %681 = vmatprep.subr.mxu0 0.0
    %682 = vmatpush1.msra.mxu0 0.0
    %683 = vmatprep.subr.mxu0 0.0
    %684 = vmatpush1.msra.mxu0 0.0
    %685 = vmatprep.subr.mxu0 0.0
    %686 = vmatpush1.msra.mxu0 0.0
    %687 = vmatprep.subr.mxu0 0.0
    %688 = vmatpush1.msra.mxu0 0.0
    %689 = vmatprep.subr.mxu0 0.0
    %690 = vmatpush1.msra.mxu0 0.0
    %691 = vmatprep.subr.mxu0 0.0
    %692 = vmatpush1.msra.mxu0 0.0
    %693 = vmatprep.subr.mxu0 0.0
    %694 = vmatpush1.msra.mxu0 0.0
    %695 = vmatprep.subr.mxu0 0.0
    %696 = vmatpush1.msra.mxu0 0.0
    %697 = vmatprep.subr.mxu0 0.0
    %698 = vmatpush1.msra.mxu0 0.0
    %699 = vmatprep.subr.mxu0 0.0
    %700 = vmatpush1.msra.mxu0 0.0
    %701 = vmatprep.subr.mxu0 0.0
    %702 = vmatpush1.msra.mxu0 0.0
    %703 = vmatprep.subr.mxu0 0.0
    %704 = vmatpush1.msra.mxu0 0.0
    %705 = vmatprep.subr.mxu0 0.0
    %706 = vmatpush1.msra.mxu0 0.0
    %707 = vmatprep.subr.mxu0 0.0
    %708 = vmatpush1.msra.mxu0 0.0
    %709 = vmatprep.subr.mxu0 0.0
    %710 = vmatpush1.msra.mxu0 0.0
    %711 = vmatprep.subr.mxu0 0.0
    %712 = vmatpush1.msra.mxu0 0.0
    %713 = vmatprep.subr.mxu0 0.0
    %714 = vmatpush1.msra.mxu0 0.0
    %715 = vmatprep.subr.mxu0 0.0
    %716 = vmatpush1.msra.mxu0 0.0
    %717 = vmatprep.subr.mxu0 0.0
    %718 = vmatpush1.msra.mxu0 0.0
    %719 = vmatprep.subr.mxu0 0.0
    %720 = vmatpush1.msra.mxu0 0.0
    %721 = vmatprep.subr.mxu0 0.0
    %722 = vmatpush1.msra.mxu0 0.0
    %723 = vmatprep.subr.mxu0 0.0
    %724 = vmatpush1.msra.mxu0 0.0
    %725 = vmatprep.subr.mxu0 0.0
    %726 = vmatpush1.msra.mxu0 0.0
    %727 = vmatprep.mubr.f32.mxu0 0.0
    %728 = vmatmul.mubr.f32.gmra.mrb[0].mxu0 %v661
    %v729 = vpop.f32.mrb[0].mxu0
    %v730 = vadd.f32 0.0, %v729
    %v731 = vpop.f32.mrb[0].mxu0
    %732 = vdwg.mxu0
    %v733 = vadd.f32 %v196, %v730
    %v734 = vtanh.pop %v733
    %v735 = vmul.f32 %v734, 0.5
    %v736 = vadd.f32 %v735, 0.5
    %v737 = vmul.f32 %v736, %v651
    %739 = vrot.lane.b32.xlu0 %v734, 64
    %v740 = vpop.permute.xlu0 %739
    %v742 = vmul.f32 %v736, %v740
    %744 = vrot.lane.b32.xlu0 %v742, 32
    %v745 = vpop.permute.xlu0 %744
    %v747 = vadd.f32 %v737, %v745
    %v748 = vtanh.pop %v747
    %750 = vrot.lane.b32.xlu0 %v748, 64
    %v751 = vpop.permute.xlu0 %750
    %v753 = vmul.f32 %v736, %v751
    %755 = vrot.lane.b32.xlu0 %v753, 32
    %v756 = vpop.permute.xlu0 %755
    %v757 = vsel %vm276, %v756, 0
    %759 = vmatprep.subr.mxu0 0.0
    %760 = vmatpush1.msra.mxu0 %v249
    %761 = vmatprep.subr.mxu0 0.0
    %762 = vmatpush1.msra.mxu0 %v250
    %763 = vmatprep.subr.mxu0 0.0
    %764 = vmatpush1.msra.mxu0 %v251
    %765 = vmatprep.subr.mxu0 0.0
    %766 = vmatpush1.msra.mxu0 %v252
    %767 = vmatprep.subr.mxu0 0.0
    %768 = vmatpush1.msra.mxu0 0.0
    %769 = vmatprep.subr.mxu0 0.0
    %770 = vmatpush1.msra.mxu0 0.0
    %771 = vmatprep.subr.mxu0 0.0
    %772 = vmatpush1.msra.mxu0 0.0
    %773 = vmatprep.subr.mxu0 0.0
    %774 = vmatpush1.msra.mxu0 0.0
    %775 = vmatprep.subr.mxu0 0.0
    %776 = vmatpush1.msra.mxu0 0.0
    %777 = vmatprep.subr.mxu0 0.0
    %778 = vmatpush1.msra.mxu0 0.0
    %779 = vmatprep.subr.mxu0 0.0
    %780 = vmatpush1.msra.mxu0 0.0
    %781 = vmatprep.subr.mxu0 0.0
    %782 = vmatpush1.msra.mxu0 0.0
    %783 = vmatprep.subr.mxu0 0.0
    %784 = vmatpush1.msra.mxu0 0.0
    %785 = vmatprep.subr.mxu0 0.0
    %786 = vmatpush1.msra.mxu0 0.0
    %787 = vmatprep.subr.mxu0 0.0
    %788 = vmatpush1.msra.mxu0 0.0
    %789 = vmatprep.subr.mxu0 0.0
    %790 = vmatpush1.msra.mxu0 0.0
    %791 = vmatprep.subr.mxu0 0.0
    %792 = vmatpush1.msra.mxu0 0.0
    %793 = vmatprep.subr.mxu0 0.0
    %794 = vmatpush1.msra.mxu0 0.0
    %795 = vmatprep.subr.mxu0 0.0
    %796 = vmatpush1.msra.mxu0 0.0
    %797 = vmatprep.subr.mxu0 0.0
    %798 = vmatpush1.msra.mxu0 0.0
    %799 = vmatprep.subr.mxu0 0.0
    %800 = vmatpush1.msra.mxu0 0.0
    %801 = vmatprep.subr.mxu0 0.0
    %802 = vmatpush1.msra.mxu0 0.0
    %803 = vmatprep.subr.mxu0 0.0
    %804 = vmatpush1.msra.mxu0 0.0
    %805 = vmatprep.subr.mxu0 0.0
    %806 = vmatpush1.msra.mxu0 0.0
    %807 = vmatprep.subr.mxu0 0.0
    %808 = vmatpush1.msra.mxu0 0.0
    %809 = vmatprep.subr.mxu0 0.0
    %810 = vmatpush1.msra.mxu0 0.0
    %811 = vmatprep.subr.mxu0 0.0
    %812 = vmatpush1.msra.mxu0 0.0
    %813 = vmatprep.subr.mxu0 0.0
    %814 = vmatpush1.msra.mxu0 0.0
    %815 = vmatprep.subr.mxu0 0.0
    %816 = vmatpush1.msra.mxu0 0.0
    %817 = vmatprep.subr.mxu0 0.0
    %818 = vmatpush1.msra.mxu0 0.0
    %819 = vmatprep.subr.mxu0 0.0
    %820 = vmatpush1.msra.mxu0 0.0
    %821 = vmatprep.subr.mxu0 0.0
    %822 = vmatpush1.msra.mxu0 0.0
    %823 = vmatprep.mubr.f32.mxu0 0.0
    %824 = vmatmul.mubr.f32.gmra.mrb[0].mxu0 %v757
    %v825 = vpop.f32.mrb[0].mxu0
    %v826 = vadd.f32 0.0, %v825
    %v827 = vpop.f32.mrb[0].mxu0
    %828 = vdwg.mxu0
    %v829 = vadd.f32 %v201, %v826
    %v830 = vtanh.pop %v829
    %v831 = vmul.f32 %v830, 0.5
    %v832 = vadd.f32 %v831, 0.5
    %v833 = vmul.f32 %v832, %v747
    %835 = vrot.lane.b32.xlu0 %v830, 64
    %v836 = vpop.permute.xlu0 %835
    %v838 = vmul.f32 %v832, %v836
    %840 = vrot.lane.b32.xlu0 %v838, 32
    %v841 = vpop.permute.xlu0 %840
    %v843 = vadd.f32 %v833, %v841
    %v844 = vtanh.pop %v843
    %846 = vrot.lane.b32.xlu0 %v844, 64
    %v847 = vpop.permute.xlu0 %846
    %v849 = vmul.f32 %v832, %v847
    %851 = vrot.lane.b32.xlu0 %v849, 32
    %v852 = vpop.permute.xlu0 %851
    %v853 = vsel %vm276, %v852, 0
    %855 = vmatprep.subr.mxu0 0.0
    %856 = vmatpush1.msra.mxu0 %v249
    %857 = vmatprep.subr.mxu0 0.0
    %858 = vmatpush1.msra.mxu0 %v250
    %859 = vmatprep.subr.mxu0 0.0
    %860 = vmatpush1.msra.mxu0 %v251
    %861 = vmatprep.subr.mxu0 0.0
    %862 = vmatpush1.msra.mxu0 %v252
    %863 = vmatprep.subr.mxu0 0.0
    %864 = vmatpush1.msra.mxu0 0.0
    %865 = vmatprep.subr.mxu0 0.0
    %866 = vmatpush1.msra.mxu0 0.0
    %867 = vmatprep.subr.mxu0 0.0
    %868 = vmatpush1.msra.mxu0 0.0
    %869 = vmatprep.subr.mxu0 0.0
    %870 = vmatpush1.msra.mxu0 0.0
    %871 = vmatprep.subr.mxu0 0.0
    %872 = vmatpush1.msra.mxu0 0.0
    %873 = vmatprep.subr.mxu0 0.0
    %874 = vmatpush1.msra.mxu0 0.0
    %875 = vmatprep.subr.mxu0 0.0
    %876 = vmatpush1.msra.mxu0 0.0
    %877 = vmatprep.subr.mxu0 0.0
    %878 = vmatpush1.msra.mxu0 0.0
    %879 = vmatprep.subr.mxu0 0.0
    %880 = vmatpush1.msra.mxu0 0.0
    %881 = vmatprep.subr.mxu0 0.0
    %882 = vmatpush1.msra.mxu0 0.0
    %883 = vmatprep.subr.mxu0 0.0
    %884 = vmatpush1.msra.mxu0 0.0
    %885 = vmatprep.subr.mxu0 0.0
    %886 = vmatpush1.msra.mxu0 0.0
    %887 = vmatprep.subr.mxu0 0.0
    %888 = vmatpush1.msra.mxu0 0.0
    %889 = vmatprep.subr.mxu0 0.0
    %890 = vmatpush1.msra.mxu0 0.0
    %891 = vmatprep.subr.mxu0 0.0
    %892 = vmatpush1.msra.mxu0 0.0
    %893 = vmatprep.subr.mxu0 0.0
    %894 = vmatpush1.msra.mxu0 0.0
    %895 = vmatprep.subr.mxu0 0.0
    %896 = vmatpush1.msra.mxu0 0.0
    %897 = vmatprep.subr.mxu0 0.0
    %898 = vmatpush1.msra.mxu0 0.0
    %899 = vmatprep.subr.mxu0 0.0
    %900 = vmatpush1.msra.mxu0 0.0
    %901 = vmatprep.subr.mxu0 0.0
    %902 = vmatpush1.msra.mxu0 0.0
    %903 = vmatprep.subr.mxu0 0.0
    %904 = vmatpush1.msra.mxu0 0.0
    %905 = vmatprep.subr.mxu0 0.0
    %906 = vmatpush1.msra.mxu0 0.0
    %907 = vmatprep.subr.mxu0 0.0
    %908 = vmatpush1.msra.mxu0 0.0
    %909 = vmatprep.subr.mxu0 0.0
    %910 = vmatpush1.msra.mxu0 0.0
    %911 = vmatprep.subr.mxu0 0.0
    %912 = vmatpush1.msra.mxu0 0.0
    %913 = vmatprep.subr.mxu0 0.0
    %914 = vmatpush1.msra.mxu0 0.0
    %915 = vmatprep.subr.mxu0 0.0
    %916 = vmatpush1.msra.mxu0 0.0
    %917 = vmatprep.subr.mxu0 0.0
    %918 = vmatpush1.msra.mxu0 0.0
    %919 = vmatprep.mubr.f32.mxu0 0.0
    %920 = vmatmul.mubr.f32.gmra.mrb[0].mxu0 %v853
    %v921 = vpop.f32.mrb[0].mxu0
    %v922 = vadd.f32 0.0, %v921
    %v923 = vpop.f32.mrb[0].mxu0
    %924 = vdwg.mxu0
    %v925 = vadd.f32 %v206, %v922
    %v926 = vtanh.pop %v925
    %v927 = vmul.f32 %v926, 0.5
    %v928 = vadd.f32 %v927, 0.5
    %v929 = vmul.f32 %v928, %v843
    %931 = vrot.lane.b32.xlu0 %v926, 64
    %v932 = vpop.permute.xlu0 %931
    %v934 = vmul.f32 %v928, %v932
    %936 = vrot.lane.b32.xlu0 %v934, 32
    %v937 = vpop.permute.xlu0 %936
    %v939 = vadd.f32 %v929, %v937
    %v940 = vtanh.pop %v939
    %942 = vrot.lane.b32.xlu0 %v940, 64
    %v943 = vpop.permute.xlu0 %942
    %v945 = vmul.f32 %v928, %v943
    %947 = vrot.lane.b32.xlu0 %v945, 32
    %v948 = vpop.permute.xlu0 %947
    %v949 = vsel %vm276, %v948, 0
    %951 = vmatprep.subr.mxu0 0.0
    %952 = vmatpush1.msra.mxu0 %v249
    %953 = vmatprep.subr.mxu0 0.0
    %954 = vmatpush1.msra.mxu0 %v250
    %955 = vmatprep.subr.mxu0 0.0
    %956 = vmatpush1.msra.mxu0 %v251
    %957 = vmatprep.subr.mxu0 0.0
    %958 = vmatpush1.msra.mxu0 %v252
    %959 = vmatprep.subr.mxu0 0.0
    %960 = vmatpush1.msra.mxu0 0.0
    %961 = vmatprep.subr.mxu0 0.0
    %962 = vmatpush1.msra.mxu0 0.0
    %963 = vmatprep.subr.mxu0 0.0
    %964 = vmatpush1.msra.mxu0 0.0
    %965 = vmatprep.subr.mxu0 0.0
    %966 = vmatpush1.msra.mxu0 0.0
    %967 = vmatprep.subr.mxu0 0.0
    %968 = vmatpush1.msra.mxu0 0.0
    %969 = vmatprep.subr.mxu0 0.0
    %970 = vmatpush1.msra.mxu0 0.0
    %971 = vmatprep.subr.mxu0 0.0
    %972 = vmatpush1.msra.mxu0 0.0
    %973 = vmatprep.subr.mxu0 0.0
    %974 = vmatpush1.msra.mxu0 0.0
    %975 = vmatprep.subr.mxu0 0.0
    %976 = vmatpush1.msra.mxu0 0.0
    %977 = vmatprep.subr.mxu0 0.0
    %978 = vmatpush1.msra.mxu0 0.0
    %979 = vmatprep.subr.mxu0 0.0
    %980 = vmatpush1.msra.mxu0 0.0
    %981 = vmatprep.subr.mxu0 0.0
    %982 = vmatpush1.msra.mxu0 0.0
    %983 = vmatprep.subr.mxu0 0.0
    %984 = vmatpush1.msra.mxu0 0.0
    %985 = vmatprep.subr.mxu0 0.0
    %986 = vmatpush1.msra.mxu0 0.0
    %987 = vmatprep.subr.mxu0 0.0
    %988 = vmatpush1.msra.mxu0 0.0
    %989 = vmatprep.subr.mxu0 0.0
    %990 = vmatpush1.msra.mxu0 0.0
    %991 = vmatprep.subr.mxu0 0.0
    %992 = vmatpush1.msra.mxu0 0.0
    %993 = vmatprep.subr.mxu0 0.0
    %994 = vmatpush1.msra.mxu0 0.0
    %995 = vmatprep.subr.mxu0 0.0
    %996 = vmatpush1.msra.mxu0 0.0
    %997 = vmatprep.subr.mxu0 0.0
    %998 = vmatpush1.msra.mxu0 0.0
    %999 = vmatprep.subr.mxu0 0.0
    %1000 = vmatpush1.msra.mxu0 0.0
    %1001 = vmatprep.subr.mxu0 0.0
    %1002 = vmatpush1.msra.mxu0 0.0
    %1003 = vmatprep.subr.mxu0 0.0
    %1004 = vmatpush1.msra.mxu0 0.0
    %1005 = vmatprep.subr.mxu0 0.0
    %1006 = vmatpush1.msra.mxu0 0.0
    %1007 = vmatprep.subr.mxu0 0.0
    %1008 = vmatpush1.msra.mxu0 0.0
    %1009 = vmatprep.subr.mxu0 0.0
    %1010 = vmatpush1.msra.mxu0 0.0
    %1011 = vmatprep.subr.mxu0 0.0
    %1012 = vmatpush1.msra.mxu0 0.0
    %1013 = vmatprep.subr.mxu0 0.0
    %1014 = vmatpush1.msra.mxu0 0.0
    %1015 = vmatprep.mubr.f32.mxu0 0.0
    %1016 = vmatmul.mubr.f32.gmra.mrb[0].mxu0 %v949
    %v1017 = vpop.f32.mrb[0].mxu0
    %v1018 = vadd.f32 0.0, %v1017
    %v1019 = vpop.f32.mrb[0].mxu0
    %1020 = vdwg.mxu0
    %v1021 = vadd.f32 %v211, %v1018
    %v1022 = vtanh.pop %v1021
    %v1023 = vmul.f32 %v1022, 0.5
    %v1024 = vadd.f32 %v1023, 0.5
    %v1025 = vmul.f32 %v1024, %v939
    %1027 = vrot.lane.b32.xlu0 %v1022, 64
    %v1028 = vpop.permute.xlu0 %1027
    %v1030 = vmul.f32 %v1024, %v1028
    %1032 = vrot.lane.b32.xlu0 %v1030, 32
    %v1033 = vpop.permute.xlu0 %1032
    %v1035 = vadd.f32 %v1025, %v1033
    %v1036 = vtanh.pop %v1035
    %1038 = vrot.lane.b32.xlu0 %v1036, 64
    %v1039 = vpop.permute.xlu0 %1038
    %v1041 = vmul.f32 %v1024, %v1039
    %1043 = vrot.lane.b32.xlu0 %v1041, 32
    %v1044 = vpop.permute.xlu0 %1043
    %v1045 = vsel %vm276, %v1044, 0
    %1047 = vmatprep.subr.mxu0 0.0
    %1048 = vmatpush1.msra.mxu0 %v249
    %1049 = vmatprep.subr.mxu0 0.0
    %1050 = vmatpush1.msra.mxu0 %v250
    %1051 = vmatprep.subr.mxu0 0.0
    %1052 = vmatpush1.msra.mxu0 %v251
    %1053 = vmatprep.subr.mxu0 0.0
    %1054 = vmatpush1.msra.mxu0 %v252
    %1055 = vmatprep.subr.mxu0 0.0
    %1056 = vmatpush1.msra.mxu0 0.0
    %1057 = vmatprep.subr.mxu0 0.0
    %1058 = vmatpush1.msra.mxu0 0.0
    %1059 = vmatprep.subr.mxu0 0.0
    %1060 = vmatpush1.msra.mxu0 0.0
    %1061 = vmatprep.subr.mxu0 0.0
    %1062 = vmatpush1.msra.mxu0 0.0
    %1063 = vmatprep.subr.mxu0 0.0
    %1064 = vmatpush1.msra.mxu0 0.0
    %1065 = vmatprep.subr.mxu0 0.0
    %1066 = vmatpush1.msra.mxu0 0.0
    %1067 = vmatprep.subr.mxu0 0.0
    %1068 = vmatpush1.msra.mxu0 0.0
    %1069 = vmatprep.subr.mxu0 0.0
    %1070 = vmatpush1.msra.mxu0 0.0
    %1071 = vmatprep.subr.mxu0 0.0
    %1072 = vmatpush1.msra.mxu0 0.0
    %1073 = vmatprep.subr.mxu0 0.0
    %1074 = vmatpush1.msra.mxu0 0.0
    %1075 = vmatprep.subr.mxu0 0.0
    %1076 = vmatpush1.msra.mxu0 0.0
    %1077 = vmatprep.subr.mxu0 0.0
    %1078 = vmatpush1.msra.mxu0 0.0
    %1079 = vmatprep.subr.mxu0 0.0
    %1080 = vmatpush1.msra.mxu0 0.0
    %1081 = vmatprep.subr.mxu0 0.0
    %1082 = vmatpush1.msra.mxu0 0.0
    %1083 = vmatprep.subr.mxu0 0.0
    %1084 = vmatpush1.msra.mxu0 0.0
    %1085 = vmatprep.subr.mxu0 0.0
    %1086 = vmatpush1.msra.mxu0 0.0
    %1087 = vmatprep.subr.mxu0 0.0
    %1088 = vmatpush1.msra.mxu0 0.0
    %1089 = vmatprep.subr.mxu0 0.0
    %1090 = vmatpush1.msra.mxu0 0.0
    %1091 = vmatprep.subr.mxu0 0.0
    %1092 = vmatpush1.msra.mxu0 0.0
    %1093 = vmatprep.subr.mxu0 0.0
    %1094 = vmatpush1.msra.mxu0 0.0
    %1095 = vmatprep.subr.mxu0 0.0
    %1096 = vmatpush1.msra.mxu0 0.0
    %1097 = vmatprep.subr.mxu0 0.0
    %1098 = vmatpush1.msra.mxu0 0.0
    %1099 = vmatprep.subr.mxu0 0.0
    %1100 = vmatpush1.msra.mxu0 0.0
    %1101 = vmatprep.subr.mxu0 0.0
    %1102 = vmatpush1.msra.mxu0 0.0
    %1103 = vmatprep.subr.mxu0 0.0
    %1104 = vmatpush1.msra.mxu0 0.0
    %1105 = vmatprep.subr.mxu0 0.0
    %1106 = vmatpush1.msra.mxu0 0.0
    %1107 = vmatprep.subr.mxu0 0.0
    %1108 = vmatpush1.msra.mxu0 0.0
    %1109 = vmatprep.subr.mxu0 0.0
    %1110 = vmatpush1.msra.mxu0 0.0
    %1111 = vmatprep.mubr.f32.mxu0 0.0
    %1112 = vmatmul.mubr.f32.gmra.mrb[0].mxu0 %v1045
    %v1113 = vpop.f32.mrb[0].mxu0
    %v1114 = vadd.f32 0.0, %v1113
    %v1115 = vpop.f32.mrb[0].mxu0
    %1116 = vdwg.mxu0
    %v1117 = vadd.f32 %v216, %v1114
    %v1118 = vtanh.pop %v1117
    %v1119 = vmul.f32 %v1118, 0.5
    %v1120 = vadd.f32 %v1119, 0.5
    %v1121 = vmul.f32 %v1120, %v1035
    %1123 = vrot.lane.b32.xlu0 %v1118, 64
    %v1124 = vpop.permute.xlu0 %1123
    %v1126 = vmul.f32 %v1120, %v1124
    %1128 = vrot.lane.b32.xlu0 %v1126, 32
    %v1129 = vpop.permute.xlu0 %1128
    %v1131 = vadd.f32 %v1121, %v1129
    %v1132 = vtanh.pop %v1131
    %1134 = vrot.lane.b32.xlu0 %v1132, 64
    %v1135 = vpop.permute.xlu0 %1134
    %v1137 = vmul.f32 %v1120, %v1135
    %1139 = vrot.lane.b32.xlu0 %v1137, 32
    %v1140 = vpop.permute.xlu0 %1139
    %v1141 = vsel %vm276, %v1140, 0
    %1143 = vmatprep.subr.mxu0 0.0
    %1144 = vmatpush1.msra.mxu0 %v249
    %1145 = vmatprep.subr.mxu0 0.0
    %1146 = vmatpush1.msra.mxu0 %v250
    %1147 = vmatprep.subr.mxu0 0.0
    %1148 = vmatpush1.msra.mxu0 %v251
    %1149 = vmatprep.subr.mxu0 0.0
    %1150 = vmatpush1.msra.mxu0 %v252
    %1151 = vmatprep.subr.mxu0 0.0
    %1152 = vmatpush1.msra.mxu0 0.0
    %1153 = vmatprep.subr.mxu0 0.0
    %1154 = vmatpush1.msra.mxu0 0.0
    %1155 = vmatprep.subr.mxu0 0.0
    %1156 = vmatpush1.msra.mxu0 0.0
    %1157 = vmatprep.subr.mxu0 0.0
    %1158 = vmatpush1.msra.mxu0 0.0
    %1159 = vmatprep.subr.mxu0 0.0
    %1160 = vmatpush1.msra.mxu0 0.0
    %1161 = vmatprep.subr.mxu0 0.0
    %1162 = vmatpush1.msra.mxu0 0.0
    %1163 = vmatprep.subr.mxu0 0.0
    %1164 = vmatpush1.msra.mxu0 0.0
    %1165 = vmatprep.subr.mxu0 0.0
    %1166 = vmatpush1.msra.mxu0 0.0
    %1167 = vmatprep.subr.mxu0 0.0
    %1168 = vmatpush1.msra.mxu0 0.0
    %1169 = vmatprep.subr.mxu0 0.0
    %1170 = vmatpush1.msra.mxu0 0.0
    %1171 = vmatprep.subr.mxu0 0.0
    %1172 = vmatpush1.msra.mxu0 0.0
    %1173 = vmatprep.subr.mxu0 0.0
    %1174 = vmatpush1.msra.mxu0 0.0
    %1175 = vmatprep.subr.mxu0 0.0
    %1176 = vmatpush1.msra.mxu0 0.0
    %1177 = vmatprep.subr.mxu0 0.0
    %1178 = vmatpush1.msra.mxu0 0.0
    %1179 = vmatprep.subr.mxu0 0.0
    %1180 = vmatpush1.msra.mxu0 0.0
    %1181 = vmatprep.subr.mxu0 0.0
    %1182 = vmatpush1.msra.mxu0 0.0
    %1183 = vmatprep.subr.mxu0 0.0
    %1184 = vmatpush1.msra.mxu0 0.0
    %1185 = vmatprep.subr.mxu0 0.0
    %1186 = vmatpush1.msra.mxu0 0.0
    %1187 = vmatprep.subr.mxu0 0.0
    %1188 = vmatpush1.msra.mxu0 0.0
    %1189 = vmatprep.subr.mxu0 0.0
    %1190 = vmatpush1.msra.mxu0 0.0
    %1191 = vmatprep.subr.mxu0 0.0
    %1192 = vmatpush1.msra.mxu0 0.0
    %1193 = vmatprep.subr.mxu0 0.0
    %1194 = vmatpush1.msra.mxu0 0.0
    %1195 = vmatprep.subr.mxu0 0.0
    %1196 = vmatpush1.msra.mxu0 0.0
    %1197 = vmatprep.subr.mxu0 0.0
    %1198 = vmatpush1.msra.mxu0 0.0
    %1199 = vmatprep.subr.mxu0 0.0
    %1200 = vmatpush1.msra.mxu0 0.0
    %1201 = vmatprep.subr.mxu0 0.0
    %1202 = vmatpush1.msra.mxu0 0.0
    %1203 = vmatprep.subr.mxu0 0.0
    %1204 = vmatpush1.msra.mxu0 0.0
    %1205 = vmatprep.subr.mxu0 0.0
    %1206 = vmatpush1.msra.mxu0 0.0
    %1207 = vmatprep.mubr.f32.mxu0 0.0
    %1208 = vmatmul.mubr.f32.gmra.mrb[0].mxu0 %v1141
    %v1209 = vpop.f32.mrb[0].mxu0
    %v1210 = vadd.f32 0.0, %v1209
    %v1211 = vpop.f32.mrb[0].mxu0
    %1212 = vdwg.mxu0
    %v1213 = vadd.f32 %v221, %v1210
    %v1214 = vtanh.pop %v1213
    %v1215 = vmul.f32 %v1214, 0.5
    %v1216 = vadd.f32 %v1215, 0.5
    %v1217 = vmul.f32 %v1216, %v1131
    %1219 = vrot.lane.b32.xlu0 %v1214, 64
    %v1220 = vpop.permute.xlu0 %1219
    %v1222 = vmul.f32 %v1216, %v1220
    %1224 = vrot.lane.b32.xlu0 %v1222, 32
    %v1225 = vpop.permute.xlu0 %1224
    %v1227 = vadd.f32 %v1217, %v1225
    %v1228 = vtanh.pop %v1227
    %1230 = vrot.lane.b32.xlu0 %v1228, 64
    %v1231 = vpop.permute.xlu0 %1230
    %v1233 = vmul.f32 %v1216, %v1231
    %1235 = vrot.lane.b32.xlu0 %v1233, 32
    %v1236 = vpop.permute.xlu0 %1235
    %v1237 = vsel %vm276, %v1236, 0
    %1239 = vmatprep.subr.mxu0 0.0
    %1240 = vmatpush1.msra.mxu0 %v249
    %1241 = vmatprep.subr.mxu0 0.0
    %1242 = vmatpush1.msra.mxu0 %v250
    %1243 = vmatprep.subr.mxu0 0.0
    %1244 = vmatpush1.msra.mxu0 %v251
    %1245 = vmatprep.subr.mxu0 0.0
    %1246 = vmatpush1.msra.mxu0 %v252
    %1247 = vmatprep.subr.mxu0 0.0
    %1248 = vmatpush1.msra.mxu0 0.0
    %1249 = vmatprep.subr.mxu0 0.0
    %1250 = vmatpush1.msra.mxu0 0.0
    %1251 = vmatprep.subr.mxu0 0.0
    %1252 = vmatpush1.msra.mxu0 0.0
    %1253 = vmatprep.subr.mxu0 0.0
    %1254 = vmatpush1.msra.mxu0 0.0
    %1255 = vmatprep.subr.mxu0 0.0
    %1256 = vmatpush1.msra.mxu0 0.0
    %1257 = vmatprep.subr.mxu0 0.0
    %1258 = vmatpush1.msra.mxu0 0.0
    %1259 = vmatprep.subr.mxu0 0.0
    %1260 = vmatpush1.msra.mxu0 0.0
    %1261 = vmatprep.subr.mxu0 0.0
    %1262 = vmatpush1.msra.mxu0 0.0
    %1263 = vmatprep.subr.mxu0 0.0
    %1264 = vmatpush1.msra.mxu0 0.0
    %1265 = vmatprep.subr.mxu0 0.0
    %1266 = vmatpush1.msra.mxu0 0.0
    %1267 = vmatprep.subr.mxu0 0.0
    %1268 = vmatpush1.msra.mxu0 0.0
    %1269 = vmatprep.subr.mxu0 0.0
    %1270 = vmatpush1.msra.mxu0 0.0
    %1271 = vmatprep.subr.mxu0 0.0
    %1272 = vmatpush1.msra.mxu0 0.0
    %1273 = vmatprep.subr.mxu0 0.0
    %1274 = vmatpush1.msra.mxu0 0.0
    %1275 = vmatprep.subr.mxu0 0.0
    %1276 = vmatpush1.msra.mxu0 0.0
    %1277 = vmatprep.subr.mxu0 0.0
    %1278 = vmatpush1.msra.mxu0 0.0
    %1279 = vmatprep.subr.mxu0 0.0
    %1280 = vmatpush1.msra.mxu0 0.0
    %1281 = vmatprep.subr.mxu0 0.0
    %1282 = vmatpush1.msra.mxu0 0.0
    %1283 = vmatprep.subr.mxu0 0.0
    %1284 = vmatpush1.msra.mxu0 0.0
    %1285 = vmatprep.subr.mxu0 0.0
    %1286 = vmatpush1.msra.mxu0 0.0
    %1287 = vmatprep.subr.mxu0 0.0
    %1288 = vmatpush1.msra.mxu0 0.0
    %1289 = vmatprep.subr.mxu0 0.0
    %1290 = vmatpush1.msra.mxu0 0.0
    %1291 = vmatprep.subr.mxu0 0.0
    %1292 = vmatpush1.msra.mxu0 0.0
    %1293 = vmatprep.subr.mxu0 0.0
    %1294 = vmatpush1.msra.mxu0 0.0
    %1295 = vmatprep.subr.mxu0 0.0
    %1296 = vmatpush1.msra.mxu0 0.0
    %1297 = vmatprep.subr.mxu0 0.0
    %1298 = vmatpush1.msra.mxu0 0.0
    %1299 = vmatprep.subr.mxu0 0.0
    %1300 = vmatpush1.msra.mxu0 0.0
    %1301 = vmatprep.subr.mxu0 0.0
    %1302 = vmatpush1.msra.mxu0 0.0
    %1303 = vmatprep.mubr.f32.mxu0 0.0
    %1304 = vmatmul.mubr.f32.gmra.mrb[0].mxu0 %v1237
    %v1305 = vpop.f32.mrb[0].mxu0
    %v1306 = vadd.f32 0.0, %v1305
    %v1307 = vpop.f32.mrb[0].mxu0
    %1308 = vdwg.mxu0
    %v1309 = vadd.f32 %v226, %v1306
    %v1310 = vtanh.pop %v1309
    %v1311 = vmul.f32 %v1310, 0.5
    %v1312 = vadd.f32 %v1311, 0.5
    %v1313 = vmul.f32 %v1312, %v1227
    %1315 = vrot.lane.b32.xlu0 %v1310, 64
    %v1316 = vpop.permute.xlu0 %1315
    %v1318 = vmul.f32 %v1312, %v1316
    %1320 = vrot.lane.b32.xlu0 %v1318, 32
    %v1321 = vpop.permute.xlu0 %1320
    %v1323 = vadd.f32 %v1313, %v1321
    %v1324 = vtanh.pop %v1323
    %1326 = vrot.lane.b32.xlu0 %v1324, 64
    %v1327 = vpop.permute.xlu0 %1326
    %v1329 = vmul.f32 %v1312, %v1327
    %1331 = vrot.lane.b32.xlu0 %v1329, 32
    %v1332 = vpop.permute.xlu0 %1331
    %v1333 = vsel %vm276, %v1332, 0
    %1335 = vmatprep.subr.mxu0 0.0
    %1336 = vmatpush1.msra.mxu0 %v249
    %1337 = vmatprep.subr.mxu0 0.0
    %1338 = vmatpush1.msra.mxu0 %v250
    %1339 = vmatprep.subr.mxu0 0.0
    %1340 = vmatpush1.msra.mxu0 %v251
    %1341 = vmatprep.subr.mxu0 0.0
    %1342 = vmatpush1.msra.mxu0 %v252
    %1343 = vmatprep.subr.mxu0 0.0
    %1344 = vmatpush1.msra.mxu0 0.0
    %1345 = vmatprep.subr.mxu0 0.0
    %1346 = vmatpush1.msra.mxu0 0.0
    %1347 = vmatprep.subr.mxu0 0.0
    %1348 = vmatpush1.msra.mxu0 0.0
    %1349 = vmatprep.subr.mxu0 0.0
    %1350 = vmatpush1.msra.mxu0 0.0
    %1351 = vmatprep.subr.mxu0 0.0
    %1352 = vmatpush1.msra.mxu0 0.0
    %1353 = vmatprep.subr.mxu0 0.0
    %1354 = vmatpush1.msra.mxu0 0.0
    %1355 = vmatprep.subr.mxu0 0.0
    %1356 = vmatpush1.msra.mxu0 0.0
    %1357 = vmatprep.subr.mxu0 0.0
    %1358 = vmatpush1.msra.mxu0 0.0
    %1359 = vmatprep.subr.mxu0 0.0
    %1360 = vmatpush1.msra.mxu0 0.0
    %1361 = vmatprep.subr.mxu0 0.0
    %1362 = vmatpush1.msra.mxu0 0.0
    %1363 = vmatprep.subr.mxu0 0.0
    %1364 = vmatpush1.msra.mxu0 0.0
    %1365 = vmatprep.subr.mxu0 0.0
    %1366 = vmatpush1.msra.mxu0 0.0
    %1367 = vmatprep.subr.mxu0 0.0
    %1368 = vmatpush1.msra.mxu0 0.0
    %1369 = vmatprep.subr.mxu0 0.0
    %1370 = vmatpush1.msra.mxu0 0.0
    %1371 = vmatprep.subr.mxu0 0.0
    %1372 = vmatpush1.msra.mxu0 0.0
    %1373 = vmatprep.subr.mxu0 0.0
    %1374 = vmatpush1.msra.mxu0 0.0
    %1375 = vmatprep.subr.mxu0 0.0
    %1376 = vmatpush1.msra.mxu0 0.0
    %1377 = vmatprep.subr.mxu0 0.0
    %1378 = vmatpush1.msra.mxu0 0.0
    %1379 = vmatprep.subr.mxu0 0.0
    %1380 = vmatpush1.msra.mxu0 0.0
    %1381 = vmatprep.subr.mxu0 0.0
    %1382 = vmatpush1.msra.mxu0 0.0
    %1383 = vmatprep.subr.mxu0 0.0
    %1384 = vmatpush1.msra.mxu0 0.0
    %1385 = vmatprep.subr.mxu0 0.0
    %1386 = vmatpush1.msra.mxu0 0.0
    %1387 = vmatprep.subr.mxu0 0.0
    %1388 = vmatpush1.msra.mxu0 0.0
    %1389 = vmatprep.subr.mxu0 0.0
    %1390 = vmatpush1.msra.mxu0 0.0
    %1391 = vmatprep.subr.mxu0 0.0
    %1392 = vmatpush1.msra.mxu0 0.0
    %1393 = vmatprep.subr.mxu0 0.0
    %1394 = vmatpush1.msra.mxu0 0.0
    %1395 = vmatprep.subr.mxu0 0.0
    %1396 = vmatpush1.msra.mxu0 0.0
    %1397 = vmatprep.subr.mxu0 0.0
    %1398 = vmatpush1.msra.mxu0 0.0
    %1399 = vmatprep.mubr.f32.mxu0 0.0
    %1400 = vmatmul.mubr.f32.gmra.mrb[0].mxu0 %v1333
    %v1401 = vpop.f32.mrb[0].mxu0
    %v1402 = vadd.f32 0.0, %v1401
    %v1403 = vpop.f32.mrb[0].mxu0
    %1404 = vdwg.mxu0
    %v1405 = vadd.f32 %v231, %v1402
    %v1406 = vtanh.pop %v1405
    %v1407 = vmul.f32 %v1406, 0.5
    %v1408 = vadd.f32 %v1407, 0.5
    %v1409 = vmul.f32 %v1408, %v1323
    %1411 = vrot.lane.b32.xlu0 %v1406, 64
    %v1412 = vpop.permute.xlu0 %1411
    %v1414 = vmul.f32 %v1408, %v1412
    %1416 = vrot.lane.b32.xlu0 %v1414, 32
    %v1417 = vpop.permute.xlu0 %1416
    %v1419 = vadd.f32 %v1409, %v1417
    %v1420 = vtanh.pop %v1419
    %1422 = vrot.lane.b32.xlu0 %v1420, 64
    %v1423 = vpop.permute.xlu0 %1422
    %v1425 = vmul.f32 %v1408, %v1423
    %1427 = vrot.lane.b32.xlu0 %v1425, 32
    %v1428 = vpop.permute.xlu0 %1427
    %v1429 = vsel %vm276, %v1428, 0
    %1431 = vmatprep.subr.mxu0 0.0
    %1432 = vmatpush1.msra.mxu0 %v249
    %1433 = vmatprep.subr.mxu0 0.0
    %1434 = vmatpush1.msra.mxu0 %v250
    %1435 = vmatprep.subr.mxu0 0.0
    %1436 = vmatpush1.msra.mxu0 %v251
    %1437 = vmatprep.subr.mxu0 0.0
    %1438 = vmatpush1.msra.mxu0 %v252
    %1439 = vmatprep.subr.mxu0 0.0
    %1440 = vmatpush1.msra.mxu0 0.0
    %1441 = vmatprep.subr.mxu0 0.0
    %1442 = vmatpush1.msra.mxu0 0.0
    %1443 = vmatprep.subr.mxu0 0.0
    %1444 = vmatpush1.msra.mxu0 0.0
    %1445 = vmatprep.subr.mxu0 0.0
    %1446 = vmatpush1.msra.mxu0 0.0
    %1447 = vmatprep.subr.mxu0 0.0
    %1448 = vmatpush1.msra.mxu0 0.0
    %1449 = vmatprep.subr.mxu0 0.0
    %1450 = vmatpush1.msra.mxu0 0.0
    %1451 = vmatprep.subr.mxu0 0.0
    %1452 = vmatpush1.msra.mxu0 0.0
    %1453 = vmatprep.subr.mxu0 0.0
    %1454 = vmatpush1.msra.mxu0 0.0
    %1455 = vmatprep.subr.mxu0 0.0
    %1456 = vmatpush1.msra.mxu0 0.0
    %1457 = vmatprep.subr.mxu0 0.0
    %1458 = vmatpush1.msra.mxu0 0.0
    %1459 = vmatprep.subr.mxu0 0.0
    %1460 = vmatpush1.msra.mxu0 0.0
    %1461 = vmatprep.subr.mxu0 0.0
    %1462 = vmatpush1.msra.mxu0 0.0
    %1463 = vmatprep.subr.mxu0 0.0
    %1464 = vmatpush1.msra.mxu0 0.0
    %1465 = vmatprep.subr.mxu0 0.0
    %1466 = vmatpush1.msra.mxu0 0.0
    %1467 = vmatprep.subr.mxu0 0.0
    %1468 = vmatpush1.msra.mxu0 0.0
    %1469 = vmatprep.subr.mxu0 0.0
    %1470 = vmatpush1.msra.mxu0 0.0
    %1471 = vmatprep.subr.mxu0 0.0
    %1472 = vmatpush1.msra.mxu0 0.0
    %1473 = vmatprep.subr.mxu0 0.0
    %1474 = vmatpush1.msra.mxu0 0.0
    %1475 = vmatprep.subr.mxu0 0.0
    %1476 = vmatpush1.msra.mxu0 0.0
    %1477 = vmatprep.subr.mxu0 0.0
    %1478 = vmatpush1.msra.mxu0 0.0
    %1479 = vmatprep.subr.mxu0 0.0
    %1480 = vmatpush1.msra.mxu0 0.0
    %1481 = vmatprep.subr.mxu0 0.0
    %1482 = vmatpush1.msra.mxu0 0.0
    %1483 = vmatprep.subr.mxu0 0.0
    %1484 = vmatpush1.msra.mxu0 0.0
    %1485 = vmatprep.subr.mxu0 0.0
    %1486 = vmatpush1.msra.mxu0 0.0
    %1487 = vmatprep.subr.mxu0 0.0
    %1488 = vmatpush1.msra.mxu0 0.0
    %1489 = vmatprep.subr.mxu0 0.0
    %1490 = vmatpush1.msra.mxu0 0.0
    %1491 = vmatprep.subr.mxu0 0.0
    %1492 = vmatpush1.msra.mxu0 0.0
    %1493 = vmatprep.subr.mxu0 0.0
    %1494 = vmatpush1.msra.mxu0 0.0
    %1495 = vmatprep.mubr.f32.mxu0 0.0
    %1496 = vmatmul.mubr.f32.gmra.mrb[0].mxu0 %v1429
    %v1497 = vpop.f32.mrb[0].mxu0
    %v1498 = vadd.f32 0.0, %v1497
    %v1499 = vpop.f32.mrb[0].mxu0
    %1500 = vdwg.mxu0
    %v1501 = vadd.f32 %v236, %v1498
    %v1502 = vtanh.pop %v1501
    %v1503 = vmul.f32 %v1502, 0.5
    %v1504 = vadd.f32 %v1503, 0.5
    %v1505 = vmul.f32 %v1504, %v1419
    %1507 = vrot.lane.b32.xlu0 %v1502, 64
    %v1508 = vpop.permute.xlu0 %1507
    %v1510 = vmul.f32 %v1504, %v1508
    %1512 = vrot.lane.b32.xlu0 %v1510, 32
    %v1513 = vpop.permute.xlu0 %1512
    %v1515 = vadd.f32 %v1505, %v1513
    %v1516 = vtanh.pop %v1515
    %1518 = vrot.lane.b32.xlu0 %v1516, 64
    %v1519 = vpop.permute.xlu0 %1518
    %v1521 = vmul.f32 %v1504, %v1519
    %1523 = vrot.lane.b32.xlu0 %v1521, 32
    %v1524 = vpop.permute.xlu0 %1523
    %v1525 = vsel %vm276, %v1524, 0
    %1527 = vmatprep.subr.mxu0 0.0
    %1528 = vmatpush1.msra.mxu0 %v249
    %1529 = vmatprep.subr.mxu0 0.0
    %1530 = vmatpush1.msra.mxu0 %v250
    %1531 = vmatprep.subr.mxu0 0.0
    %1532 = vmatpush1.msra.mxu0 %v251
    %1533 = vmatprep.subr.mxu0 0.0
    %1534 = vmatpush1.msra.mxu0 %v252
    %1535 = vmatprep.subr.mxu0 0.0
    %1536 = vmatpush1.msra.mxu0 0.0
    %1537 = vmatprep.subr.mxu0 0.0
    %1538 = vmatpush1.msra.mxu0 0.0
    %1539 = vmatprep.subr.mxu0 0.0
    %1540 = vmatpush1.msra.mxu0 0.0
    %1541 = vmatprep.subr.mxu0 0.0
    %1542 = vmatpush1.msra.mxu0 0.0
    %1543 = vmatprep.subr.mxu0 0.0
    %1544 = vmatpush1.msra.mxu0 0.0
    %1545 = vmatprep.subr.mxu0 0.0
    %1546 = vmatpush1.msra.mxu0 0.0
    %1547 = vmatprep.subr.mxu0 0.0
    %1548 = vmatpush1.msra.mxu0 0.0
    %1549 = vmatprep.subr.mxu0 0.0
    %1550 = vmatpush1.msra.mxu0 0.0
    %1551 = vmatprep.subr.mxu0 0.0
    %1552 = vmatpush1.msra.mxu0 0.0
    %1553 = vmatprep.subr.mxu0 0.0
    %1554 = vmatpush1.msra.mxu0 0.0
    %1555 = vmatprep.subr.mxu0 0.0
    %1556 = vmatpush1.msra.mxu0 0.0
    %1557 = vmatprep.subr.mxu0 0.0
    %1558 = vmatpush1.msra.mxu0 0.0
    %1559 = vmatprep.subr.mxu0 0.0
    %1560 = vmatpush1.msra.mxu0 0.0
    %1561 = vmatprep.subr.mxu0 0.0
    %1562 = vmatpush1.msra.mxu0 0.0
    %1563 = vmatprep.subr.mxu0 0.0
    %1564 = vmatpush1.msra.mxu0 0.0
    %1565 = vmatprep.subr.mxu0 0.0
    %1566 = vmatpush1.msra.mxu0 0.0
    %1567 = vmatprep.subr.mxu0 0.0
    %1568 = vmatpush1.msra.mxu0 0.0
    %1569 = vmatprep.subr.mxu0 0.0
    %1570 = vmatpush1.msra.mxu0 0.0
    %1571 = vmatprep.subr.mxu0 0.0
    %1572 = vmatpush1.msra.mxu0 0.0
    %1573 = vmatprep.subr.mxu0 0.0
    %1574 = vmatpush1.msra.mxu0 0.0
    %1575 = vmatprep.subr.mxu0 0.0
    %1576 = vmatpush1.msra.mxu0 0.0
    %1577 = vmatprep.subr.mxu0 0.0
    %1578 = vmatpush1.msra.mxu0 0.0
    %1579 = vmatprep.subr.mxu0 0.0
    %1580 = vmatpush1.msra.mxu0 0.0
    %1581 = vmatprep.subr.mxu0 0.0
    %1582 = vmatpush1.msra.mxu0 0.0
    %1583 = vmatprep.subr.mxu0 0.0
    %1584 = vmatpush1.msra.mxu0 0.0
    %1585 = vmatprep.subr.mxu0 0.0
    %1586 = vmatpush1.msra.mxu0 0.0
    %1587 = vmatprep.subr.mxu0 0.0
    %1588 = vmatpush1.msra.mxu0 0.0
    %1589 = vmatprep.subr.mxu0 0.0
    %1590 = vmatpush1.msra.mxu0 0.0
    %1591 = vmatprep.mubr.f32.mxu0 0.0
    %1592 = vmatmul.mubr.f32.gmra.mrb[0].mxu0 %v1525
    %v1593 = vpop.f32.mrb[0].mxu0
    %v1594 = vadd.f32 0.0, %v1593
    %v1595 = vpop.f32.mrb[0].mxu0
    %1596 = vdwg.mxu0
    %v1597 = vadd.f32 %v241, %v1594
    %v1598 = vtanh.pop %v1597
    %v1599 = vmul.f32 %v1598, 0.5
    %v1600 = vadd.f32 %v1599, 0.5
    %v1601 = vmul.f32 %v1600, %v1515
    %1603 = vrot.lane.b32.xlu0 %v1598, 64
    %v1604 = vpop.permute.xlu0 %1603
    %v1606 = vmul.f32 %v1600, %v1604
    %1608 = vrot.lane.b32.xlu0 %v1606, 32
    %v1609 = vpop.permute.xlu0 %1608
    %v1611 = vadd.f32 %v1601, %v1609
    %v1612 = vtanh.pop %v1611
    %1614 = vrot.lane.b32.xlu0 %v1612, 64
    %v1615 = vpop.permute.xlu0 %1614
    %v1617 = vmul.f32 %v1600, %v1615
    %1619 = vrot.lane.b32.xlu0 %v1617, 32
    %v1620 = vpop.permute.xlu0 %1619
    %v1621 = vsel %vm276, %v1620, 0
    %1623 = vmatprep.subr.mxu0 0.0
    %1624 = vmatpush1.msra.mxu0 %v249
    %1625 = vmatprep.subr.mxu0 0.0
    %1626 = vmatpush1.msra.mxu0 %v250
    %1627 = vmatprep.subr.mxu0 0.0
    %1628 = vmatpush1.msra.mxu0 %v251
    %1629 = vmatprep.subr.mxu0 0.0
    %1630 = vmatpush1.msra.mxu0 %v252
    %1631 = vmatprep.subr.mxu0 0.0
    %1632 = vmatpush1.msra.mxu0 0.0
    %1633 = vmatprep.subr.mxu0 0.0
    %1634 = vmatpush1.msra.mxu0 0.0
    %1635 = vmatprep.subr.mxu0 0.0
    %1636 = vmatpush1.msra.mxu0 0.0
    %1637 = vmatprep.subr.mxu0 0.0
    %1638 = vmatpush1.msra.mxu0 0.0
    %1639 = vmatprep.subr.mxu0 0.0
    %1640 = vmatpush1.msra.mxu0 0.0
    %1641 = vmatprep.subr.mxu0 0.0
    %1642 = vmatpush1.msra.mxu0 0.0
    %1643 = vmatprep.subr.mxu0 0.0
    %1644 = vmatpush1.msra.mxu0 0.0
    %1645 = vmatprep.subr.mxu0 0.0
    %1646 = vmatpush1.msra.mxu0 0.0
    %1647 = vmatprep.subr.mxu0 0.0
    %1648 = vmatpush1.msra.mxu0 0.0
    %1649 = vmatprep.subr.mxu0 0.0
    %1650 = vmatpush1.msra.mxu0 0.0
    %1651 = vmatprep.subr.mxu0 0.0
    %1652 = vmatpush1.msra.mxu0 0.0
    %1653 = vmatprep.subr.mxu0 0.0
    %1654 = vmatpush1.msra.mxu0 0.0
    %1655 = vmatprep.subr.mxu0 0.0
    %1656 = vmatpush1.msra.mxu0 0.0
    %1657 = vmatprep.subr.mxu0 0.0
    %1658 = vmatpush1.msra.mxu0 0.0
    %1659 = vmatprep.subr.mxu0 0.0
    %1660 = vmatpush1.msra.mxu0 0.0
    %1661 = vmatprep.subr.mxu0 0.0
    %1662 = vmatpush1.msra.mxu0 0.0
    %1663 = vmatprep.subr.mxu0 0.0
    %1664 = vmatpush1.msra.mxu0 0.0
    %1665 = vmatprep.subr.mxu0 0.0
    %1666 = vmatpush1.msra.mxu0 0.0
    %1667 = vmatprep.subr.mxu0 0.0
    %1668 = vmatpush1.msra.mxu0 0.0
    %1669 = vmatprep.subr.mxu0 0.0
    %1670 = vmatpush1.msra.mxu0 0.0
    %1671 = vmatprep.subr.mxu0 0.0
    %1672 = vmatpush1.msra.mxu0 0.0
    %1673 = vmatprep.subr.mxu0 0.0
    %1674 = vmatpush1.msra.mxu0 0.0
    %1675 = vmatprep.subr.mxu0 0.0
    %1676 = vmatpush1.msra.mxu0 0.0
    %1677 = vmatprep.subr.mxu0 0.0
    %1678 = vmatpush1.msra.mxu0 0.0
    %1679 = vmatprep.subr.mxu0 0.0
    %1680 = vmatpush1.msra.mxu0 0.0
    %1681 = vmatprep.subr.mxu0 0.0
    %1682 = vmatpush1.msra.mxu0 0.0
    %1683 = vmatprep.subr.mxu0 0.0
    %1684 = vmatpush1.msra.mxu0 0.0
    %1685 = vmatprep.subr.mxu0 0.0
    %1686 = vmatpush1.msra.mxu0 0.0
    %1687 = vmatprep.mubr.f32.mxu0 0.0
    %1688 = vmatmul.mubr.f32.gmra.mrb[0].mxu0 %v1621
    %v1689 = vpop.f32.mrb[0].mxu0
    %v1690 = vadd.f32 0.0, %v1689
    %v1691 = vpop.f32.mrb[0].mxu0
    %1692 = vdwg.mxu0
    %v1693 = vadd.f32 %v246, %v1690
    %v1694 = vtanh.pop %v1693
    %v1695 = vmul.f32 %v1694, 0.5
    %v1696 = vadd.f32 %v1695, 0.5
    %v1697 = vmul.f32 %v1696, %v1611
    %1699 = vrot.lane.b32.xlu0 %v1694, 64
    %v1700 = vpop.permute.xlu0 %1699
    %v1702 = vmul.f32 %v1696, %v1700
    %1704 = vrot.lane.b32.xlu0 %v1702, 32
    %v1705 = vpop.permute.xlu0 %1704
    %v1707 = vadd.f32 %v1697, %v1705
    %v1708 = vtanh.pop %v1707
    %1710 = vrot.lane.b32.xlu0 %v1708, 64
    %v1711 = vpop.permute.xlu0 %1710
    %v1713 = vmul.f32 %v1696, %v1711
    %v1714 = vld [vmem:[%s4] sm:$0xff]
    %v1715 = vld [vmem:[%s4 + $0x8] sm:$0xff]
    %v1716 = vld [vmem:[%s4 + $0x10] sm:$0xff]
    %v1717 = vld [vmem:[%s4 + $0x18] sm:$0xff]
    %v1718 = vld [vmem:[%s5] sm:$0x1]
    %v1720 = vlaneseq
    %v1721 = vshrl.u32 %v1720, 7
    %v1722 = vsub.s32 0, %v1721
    %v1723 = vrot.slane %v1718, %v1722
    %1726 = vrot.lane.b32.xlu0 %v1713, 32
    %v1727 = vpop.permute.xlu0 %1726
    %v1728 = vsel %vm276, %v1727, 0
    %1730 = vmatprep.subr.mxu0 0.0
    %1731 = vmatpush1.msra.mxu0 %v1714
    %1732 = vmatprep.subr.mxu0 0.0
    %1733 = vmatpush1.msra.mxu0 %v1715
    %1734 = vmatprep.subr.mxu0 0.0
    %1735 = vmatpush1.msra.mxu0 %v1716
    %1736 = vmatprep.subr.mxu0 0.0
    %1737 = vmatpush1.msra.mxu0 %v1717
    %1738 = vmatprep.subr.mxu0 0.0
    %1739 = vmatpush1.msra.mxu0 0.0
    %1740 = vmatprep.subr.mxu0 0.0
    %1741 = vmatpush1.msra.mxu0 0.0
    %1742 = vmatprep.subr.mxu0 0.0
    %1743 = vmatpush1.msra.mxu0 0.0
    %1744 = vmatprep.subr.mxu0 0.0
    %1745 = vmatpush1.msra.mxu0 0.0
    %1746 = vmatprep.subr.mxu0 0.0
    %1747 = vmatpush1.msra.mxu0 0.0
    %1748 = vmatprep.subr.mxu0 0.0
    %1749 = vmatpush1.msra.mxu0 0.0
    %1750 = vmatprep.subr.mxu0 0.0
    %1751 = vmatpush1.msra.mxu0 0.0
    %1752 = vmatprep.subr.mxu0 0.0
    %1753 = vmatpush1.msra.mxu0 0.0
    %1754 = vmatprep.subr.mxu0 0.0
    %1755 = vmatpush1.msra.mxu0 0.0
    %1756 = vmatprep.subr.mxu0 0.0
    %1757 = vmatpush1.msra.mxu0 0.0
    %1758 = vmatprep.subr.mxu0 0.0
    %1759 = vmatpush1.msra.mxu0 0.0
    %1760 = vmatprep.subr.mxu0 0.0
    %1761 = vmatpush1.msra.mxu0 0.0
    %1762 = vmatprep.subr.mxu0 0.0
    %1763 = vmatpush1.msra.mxu0 0.0
    %1764 = vmatprep.subr.mxu0 0.0
    %1765 = vmatpush1.msra.mxu0 0.0
    %1766 = vmatprep.subr.mxu0 0.0
    %1767 = vmatpush1.msra.mxu0 0.0
    %1768 = vmatprep.subr.mxu0 0.0
    %1769 = vmatpush1.msra.mxu0 0.0
    %1770 = vmatprep.subr.mxu0 0.0
    %1771 = vmatpush1.msra.mxu0 0.0
    %1772 = vmatprep.subr.mxu0 0.0
    %1773 = vmatpush1.msra.mxu0 0.0
    %1774 = vmatprep.subr.mxu0 0.0
    %1775 = vmatpush1.msra.mxu0 0.0
    %1776 = vmatprep.subr.mxu0 0.0
    %1777 = vmatpush1.msra.mxu0 0.0
    %1778 = vmatprep.subr.mxu0 0.0
    %1779 = vmatpush1.msra.mxu0 0.0
    %1780 = vmatprep.subr.mxu0 0.0
    %1781 = vmatpush1.msra.mxu0 0.0
    %1782 = vmatprep.subr.mxu0 0.0
    %1783 = vmatpush1.msra.mxu0 0.0
    %1784 = vmatprep.subr.mxu0 0.0
    %1785 = vmatpush1.msra.mxu0 0.0
    %1786 = vmatprep.subr.mxu0 0.0
    %1787 = vmatpush1.msra.mxu0 0.0
    %1788 = vmatprep.subr.mxu0 0.0
    %1789 = vmatpush1.msra.mxu0 0.0
    %1790 = vmatprep.subr.mxu0 0.0
    %1791 = vmatpush1.msra.mxu0 0.0
    %1792 = vmatprep.subr.mxu0 0.0
    %1793 = vmatpush1.msra.mxu0 0.0
    %1794 = vmatprep.mubr.f32.mxu0 0.0
    %1795 = vmatmul.mubr.f32.gmra.mrb[0].mxu0 %v1728
    %v1796 = vpop.f32.mrb[0].mxu0
    %v1797 = vadd.f32 %v1723, %v1796
    %v1798 = vpop.f32.mrb[0].mxu0
    %1799 = vdwg.mxu0
    %vm1800 = vcmask 58368
    %1801 = vst.msk [vmem:[#allocation2] sm:$0x3] %vm1800, %v1797
    // Predicated region
    $region26: #{lstm_agent_forward.1} parent=1 // pred_check
      _
    $region27: #{lstm_agent_forward.1} parent=1 // pred_check_branch
      %1803 = sbr.rel (0) target = $region29
    $region28: #{lstm_agent_forward.1} parent=1 // pred_region
      %s1805 = ssub.s32 32, 32
      %1806 = vsyncadd [#allocation3], %s1805
      %s1808 = sshll.u32 [#allocation2], 4
      %s1809 = int_to_ptr.vmem [resolvable:$true] %s1808
      %1811 = dma.vmem_to_hbm [thread:$0]  %s1809, 32, %s6, [#allocation3]
    $region29: #{lstm_agent_forward.1} parent=1 // pred_fallthru
      _
    // Predicated region
    $region30: #{lstm_agent_forward.1} parent=1 // pred_check
      _
    $region31: #{lstm_agent_forward.1} parent=1 // pred_check_branch
      %1813 = sbr.rel (0) target = $region33
    $region32: #{lstm_agent_forward.1} parent=1 // pred_region
      %1814 = dma.done [#allocation3], 32
    $region33: #{lstm_agent_forward.1} parent=1 // pred_fallthru
      _
    %1815 = vsyncpa [#allocation3], 1

</llo_original>
